<compile_context>
chip_gen: v7x
topology: tpu7x:2x2x1
jax: 0.10.0
libtpu: 0.0.40
codegen_flags: <defaults>
</compile_context>

<pallas_src>
import functools

import jax
import jax.numpy as jnp
from jax.experimental import pallas as pl
from jax.experimental.pallas import tpu as pltpu

D_IN, D_H1, D_H2, D_OUT = 784, 512, 128, 10
D_IN_PAD = 896    # 7 * 128 : pad fc1 contraction dim to a lane multiple
D_OUT_PAD = 128   # lane-dense output (masked back to 10 in the wrapper)


def mlp_kernel(x_ref, w1_ref, b1_ref, w2_ref, b2_ref, w3_ref, b3_ref, o_ref):
    # x tile: (tb, 896) bf16 ; weights bf16 ; biases f32 ; accumulation f32.
    x = x_ref[...]

    # fc1 + relu
    h1 = jnp.dot(x, w1_ref[...], preferred_element_type=jnp.float32) + b1_ref[...]
    h1 = jnp.maximum(h1, 0.0).astype(jnp.bfloat16)

    # fc2 + relu
    h2 = jnp.dot(h1, w2_ref[...], preferred_element_type=jnp.float32) + b2_ref[...]
    h2 = jnp.maximum(h2, 0.0).astype(jnp.bfloat16)

    # fc3 (padded to 128 lanes) + softmax over the real 10 classes
    logits = jnp.dot(h2, w3_ref[...], preferred_element_type=jnp.float32) + b3_ref[...]
    col = jax.lax.broadcasted_iota(jnp.int32, logits.shape, 1)
    logits = jnp.where(col < D_OUT, logits, jnp.float32(-1e30))  # mask pad lanes

    m = jnp.max(logits, axis=-1, keepdims=True)
    e = jnp.exp(logits - m)
    denom = jnp.sum(e, axis=-1, keepdims=True)
    o_ref[...] = (e * pl.reciprocal(denom, approx=True)).astype(o_ref.dtype)


@functools.partial(jax.jit, static_argnames=("tile_b",))
def mlp_forward(x, w1, b1, w2, b2, w3, b3, *, tile_b=256):
    """x: (B, 28, 28) or (B, 784). Weights (in, out); biases (out,) or (1, out)."""
    x = x.reshape(-1, D_IN)
    B = x.shape[0]

    # Batch tile: MXU-shaped by default, but never larger than the (16-row
    # aligned, bf16-friendly) batch so small batches don't get blown up.
    tb = min(tile_b, ((B + 15) // 16) * 16)
    B_pad = pl.cdiv(B, tb) * tb

    # Pad + cast inputs (zeros in the padded K columns contribute nothing).
    x_p = jnp.pad(x, ((0, B_pad - B), (0, D_IN_PAD - D_IN))).astype(jnp.bfloat16)
    w1_p = jnp.pad(w1, ((0, D_IN_PAD - D_IN), (0, 0))).astype(jnp.bfloat16)
    w2_c = w2.astype(jnp.bfloat16)
    w3_p = jnp.pad(w3, ((0, 0), (0, D_OUT_PAD - D_OUT))).astype(jnp.bfloat16)
    b1_r = b1.reshape(1, D_H1).astype(jnp.float32)
    b2_r = b2.reshape(1, D_H2).astype(jnp.float32)
    b3_p = jnp.pad(b3.reshape(1, D_OUT),
                   ((0, 0), (0, D_OUT_PAD - D_OUT))).astype(jnp.float32)

    grid = (B_pad // tb,)
    full = lambda shape: pl.BlockSpec(shape, lambda i: (0, 0))

    out = pl.pallas_call(
        mlp_kernel,
        out_shape=jax.ShapeDtypeStruct((B_pad, D_OUT_PAD), jnp.float32),
        grid_spec=pltpu.PrefetchScalarGridSpec(
            num_scalar_prefetch=0,
            grid=grid,
            in_specs=[
                pl.BlockSpec((tb, D_IN_PAD), lambda i: (i, 0)),   # x tile
                full((D_IN_PAD, D_H1)),                           # W1 (padded K)
                full((1, D_H1)),                                  # b1
                full((D_H1, D_H2)),                               # W2
                full((1, D_H2)),                                  # b2
                full((D_H2, D_OUT_PAD)),                          # W3 (padded N)
                full((1, D_OUT_PAD)),                             # b3 (padded N)
            ],
            out_specs=pl.BlockSpec((tb, D_OUT_PAD), lambda i: (i, 0)),
        ),
        compiler_params=pltpu.CompilerParams(
            dimension_semantics=("parallel",),      # batch tiles -> both TCs on v7x
            vmem_limit_bytes=32 * 1024 * 1024,      # explicit budget; fits v7x 64 MiB
        ),
    )(x_p, w1_p, b1_r, w2_c, b2_r, w3_p, b3_p)

    # Slice away batch padding and the 118 padded output lanes.
    return out[:B, :D_OUT]


def init_params(key):
    """Deterministic init mimicking torch.nn.Linear's U(-1/sqrt(in), 1/sqrt(in))."""
    ks = jax.random.split(key, 6)

    def linear(kw, kb, d_in, d_out):
        bound = 1.0 / jnp.sqrt(jnp.float32(d_in))
        w = jax.random.uniform(kw, (d_in, d_out), jnp.float32, -bound, bound)
        b = jax.random.uniform(kb, (d_out,), jnp.float32, -bound, bound)
        return w, b

    w1, b1 = linear(ks[0], ks[1], D_IN, D_H1)
    w2, b2 = linear(ks[2], ks[3], D_H1, D_H2)
    w3, b3 = linear(ks[4], ks[5], D_H2, D_OUT)
    return w1, b1, w2, b2, w3, b3


def _ref(x, w1, b1, w2, b2, w3, b3):
    xf = x.reshape(-1, D_IN)
    h1 = jax.nn.relu(xf @ w1 + b1)
    h2 = jax.nn.relu(h1 @ w2 + b2)
    return jax.nn.softmax(h2 @ w3 + b3, axis=1)


if __name__ == "__main__":
    key = jax.random.PRNGKey(0)
    k_x, k_x2, k_p = jax.random.split(key, 3)
    params = init_params(k_p)

    # Small MNIST-like batch.
    B = 32
    x = jax.random.normal(k_x, (B, 28, 28), jnp.float32)
    out = jax.block_until_ready(mlp_forward(x, *params))

    assert out.shape == (B, D_OUT)
    assert jnp.allclose(jnp.sum(out, axis=1), 1.0, atol=5e-3)
    # bf16 MXU inputs with f32 accumulation: compare loosely to the f32 reference.
    assert jnp.allclose(out, _ref(x, *params), atol=2e-2)

    # Ragged batch + multi-step grid path (B not a multiple of the tile).
    B2 = 50
    x2 = jax.random.normal(k_x2, (B2, 784), jnp.float32)
    out2 = jax.block_until_ready(mlp_forward(x2, *params, tile_b=16))
    assert out2.shape == (B2, D_OUT)
    assert jnp.allclose(jnp.sum(out2, axis=1), 1.0, atol=5e-3)
    assert jnp.allclose(out2, _ref(x2, *params), atol=2e-2)

    print("KERNEL_OK")
</pallas_src>

<mosaic_0001>
module attributes {stable_mosaic.version = 11 : i64} {
  func.func @mlp_kernel(%arg0: i32, %arg1: memref<32x896xbf16, #tpu.memory_space<vmem>>, %arg2: memref<896x512xbf16, #tpu.memory_space<vmem>>, %arg3: memref<1x512xf32, #tpu.memory_space<vmem>>, %arg4: memref<512x128xbf16, #tpu.memory_space<vmem>>, %arg5: memref<1x128xf32, #tpu.memory_space<vmem>>, %arg6: memref<128x128xbf16, #tpu.memory_space<vmem>>, %arg7: memref<1x128xf32, #tpu.memory_space<vmem>>, %arg8: memref<32x128xf32, #tpu.memory_space<vmem>>) attributes {dimension_semantics = [#tpu.dimension_semantics<parallel>], iteration_bounds = array<i64: 1>, scalar_prefetch = 0 : i64, scratch_operands = 0 : i64, tpu.core_type = #tpu.core_type<tc>, window_params = [{transform_indices = @transform_0, window_bounds = array<i64: 32, 896>}, {pipeline_mode = #tpu.pipeline_mode<synchronous>, transform_indices = @transform_1, window_bounds = array<i64: 896, 512>}, {pipeline_mode = #tpu.pipeline_mode<synchronous>, transform_indices = @transform_2, window_bounds = array<i64: 1, 512>}, {pipeline_mode = #tpu.pipeline_mode<synchronous>, transform_indices = @transform_3, window_bounds = array<i64: 512, 128>}, {pipeline_mode = #tpu.pipeline_mode<synchronous>, transform_indices = @transform_4, window_bounds = array<i64: 1, 128>}, {pipeline_mode = #tpu.pipeline_mode<synchronous>, transform_indices = @transform_5, window_bounds = array<i64: 128, 128>}, {pipeline_mode = #tpu.pipeline_mode<synchronous>, transform_indices = @transform_6, window_bounds = array<i64: 1, 128>}, {transform_indices = @transform_7, window_bounds = array<i64: 32, 128>}]} {
    %c0 = arith.constant 0 : index
    %c0_0 = arith.constant 0 : index
    %0 = vector.load %arg1[%c0, %c0_0] : memref<32x896xbf16, #tpu.memory_space<vmem>>, vector<32x896xbf16>
    %c0_1 = arith.constant 0 : index
    %c0_2 = arith.constant 0 : index
    %1 = vector.load %arg2[%c0_1, %c0_2] : memref<896x512xbf16, #tpu.memory_space<vmem>>, vector<896x512xbf16>
    %cst = arith.constant dense<0.000000e+00> : vector<32x512xf32>
    %2 = tpu.matmul %0, %1, %cst {dimension_numbers = #tpu.dot_dimension_numbers<[1], [0], [0], [1], [0, 0, 1, 1], [], []>} : vector<32x896xbf16>, vector<896x512xbf16>, vector<32x512xf32> -> vector<32x512xf32>
    %c0_3 = arith.constant 0 : index
    %c0_4 = arith.constant 0 : index
    %3 = vector.load %arg3[%c0_3, %c0_4] : memref<1x512xf32, #tpu.memory_space<vmem>>, vector<1x512xf32>
    %4 = vector.broadcast %3 : vector<1x512xf32> to vector<32x512xf32>
    %5 = arith.addf %2, %4 : vector<32x512xf32>
    %cst_5 = arith.constant 0.000000e+00 : f32
    %6 = vector.broadcast %cst_5 : f32 to vector<32x512xf32>
    %7 = arith.maximumf %5, %6 : vector<32x512xf32>
    %8 = arith.truncf %7 : vector<32x512xf32> to vector<32x512xbf16>
    %c0_6 = arith.constant 0 : index
    %c0_7 = arith.constant 0 : index
    %9 = vector.load %arg4[%c0_6, %c0_7] : memref<512x128xbf16, #tpu.memory_space<vmem>>, vector<512x128xbf16>
    %cst_8 = arith.constant dense<0.000000e+00> : vector<32x128xf32>
    %10 = tpu.matmul %8, %9, %cst_8 {dimension_numbers = #tpu.dot_dimension_numbers<[1], [0], [0], [1], [0, 0, 1, 1], [], []>} : vector<32x512xbf16>, vector<512x128xbf16>, vector<32x128xf32> -> vector<32x128xf32>
    %c0_9 = arith.constant 0 : index
    %c0_10 = arith.constant 0 : index
    %11 = vector.load %arg5[%c0_9, %c0_10] : memref<1x128xf32, #tpu.memory_space<vmem>>, vector<1x128xf32>
    %12 = vector.broadcast %11 : vector<1x128xf32> to vector<32x128xf32>
    %13 = arith.addf %10, %12 : vector<32x128xf32>
    %cst_11 = arith.constant 0.000000e+00 : f32
    %14 = vector.broadcast %cst_11 : f32 to vector<32x128xf32>
    %15 = arith.maximumf %13, %14 : vector<32x128xf32>
    %16 = arith.truncf %15 : vector<32x128xf32> to vector<32x128xbf16>
    %c0_12 = arith.constant 0 : index
    %c0_13 = arith.constant 0 : index
    %17 = vector.load %arg6[%c0_12, %c0_13] : memref<128x128xbf16, #tpu.memory_space<vmem>>, vector<128x128xbf16>
    %cst_14 = arith.constant dense<0.000000e+00> : vector<32x128xf32>
    %18 = tpu.matmul %16, %17, %cst_14 {dimension_numbers = #tpu.dot_dimension_numbers<[1], [0], [0], [1], [0, 0, 1, 1], [], []>} : vector<32x128xbf16>, vector<128x128xbf16>, vector<32x128xf32> -> vector<32x128xf32>
    %c0_15 = arith.constant 0 : index
    %c0_16 = arith.constant 0 : index
    %19 = vector.load %arg7[%c0_15, %c0_16] : memref<1x128xf32, #tpu.memory_space<vmem>>, vector<1x128xf32>
    %20 = vector.broadcast %19 : vector<1x128xf32> to vector<32x128xf32>
    %21 = arith.addf %18, %20 : vector<32x128xf32>
    %22 = tpu.iota {dimensions = array<i32: 1>} : vector<32x128xi32>
    %c10_i32 = arith.constant 10 : i32
    %23 = vector.broadcast %c10_i32 : i32 to vector<32x128xi32>
    %24 = arith.cmpi slt, %22, %23 : vector<32x128xi32>
    %cst_17 = arith.constant -1.000000e+30 : f32
    %25 = vector.broadcast %cst_17 : f32 to vector<32x128xf32>
    %26 = arith.select %24, %21, %25 : vector<32x128xi1>, vector<32x128xf32>
    %cst_18 = arith.constant dense<0xFF800000> : vector<32xf32>
    %27 = vector.multi_reduction <maximumf>, %26, %cst_18 [1] : vector<32x128xf32> to vector<32xf32>
    %28 = vector.shape_cast %27 : vector<32xf32> to vector<32x1xf32>
    %29 = vector.broadcast %28 : vector<32x1xf32> to vector<32x128xf32>
    %30 = arith.subf %26, %29 : vector<32x128xf32>
    %31 = math.exp %30 : vector<32x128xf32>
    %cst_19 = arith.constant dense<0.000000e+00> : vector<32xf32>
    %32 = vector.multi_reduction <add>, %31, %cst_19 [1] : vector<32x128xf32> to vector<32xf32>
    %33 = vector.shape_cast %32 : vector<32xf32> to vector<32x1xf32>
    %34 = tpu.reciprocal %33 {approx = true} : vector<32x1xf32> -> vector<32x1xf32>
    %35 = vector.broadcast %34 : vector<32x1xf32> to vector<32x128xf32>
    %36 = arith.mulf %31, %35 : vector<32x128xf32>
    %c0_20 = arith.constant 0 : index
    %c0_21 = arith.constant 0 : index
    %37 = vector.load %arg8[%c0_20, %c0_21] : memref<32x128xf32, #tpu.memory_space<vmem>>, vector<32x128xf32>
    tpu.vector_store %arg8[%c0_20, %c0_21], %36 {strides = array<i32>} : memref<32x128xf32, #tpu.memory_space<vmem>>, vector<32x128xf32>,
    return
  }
  func.func @transform_0(%arg0: i32) -> (i32, i32) {
    %c0_i32 = arith.constant 0 : i32
    %c0_i32_0 = arith.constant 0 : i32
    return %arg0, %c0_i32 : i32, i32
  }
  func.func @transform_1(%arg0: i32) -> (i32, i32) {
    %c0_i32 = arith.constant 0 : i32
    %c0_i32_0 = arith.constant 0 : i32
    %c0_i32_1 = arith.constant 0 : i32
    return %c0_i32, %c0_i32_0 : i32, i32
  }
  func.func @transform_2(%arg0: i32) -> (i32, i32) {
    %c0_i32 = arith.constant 0 : i32
    %c0_i32_0 = arith.constant 0 : i32
    %c0_i32_1 = arith.constant 0 : i32
    return %c0_i32, %c0_i32_0 : i32, i32
  }
  func.func @transform_3(%arg0: i32) -> (i32, i32) {
    %c0_i32 = arith.constant 0 : i32
    %c0_i32_0 = arith.constant 0 : i32
    %c0_i32_1 = arith.constant 0 : i32
    return %c0_i32, %c0_i32_0 : i32, i32
  }
  func.func @transform_4(%arg0: i32) -> (i32, i32) {
    %c0_i32 = arith.constant 0 : i32
    %c0_i32_0 = arith.constant 0 : i32
    %c0_i32_1 = arith.constant 0 : i32
    return %c0_i32, %c0_i32_0 : i32, i32
  }
  func.func @transform_5(%arg0: i32) -> (i32, i32) {
    %c0_i32 = arith.constant 0 : i32
    %c0_i32_0 = arith.constant 0 : i32
    %c0_i32_1 = arith.constant 0 : i32
    return %c0_i32, %c0_i32_0 : i32, i32
  }
  func.func @transform_6(%arg0: i32) -> (i32, i32) {
    %c0_i32 = arith.constant 0 : i32
    %c0_i32_0 = arith.constant 0 : i32
    %c0_i32_1 = arith.constant 0 : i32
    return %c0_i32, %c0_i32_0 : i32, i32
  }
  func.func @transform_7(%arg0: i32) -> (i32, i32) {
    %c0_i32 = arith.constant 0 : i32
    %c0_i32_0 = arith.constant 0 : i32
    return %arg0, %c0_i32 : i32, i32
  }
}

</mosaic_0001>

<llo_original>
// kernel: mlp_forward.1
$region0: #{mlp_forward.1}
  #allocation0 [shape = 'u32[]', space=smem, size = 0x4, offset = 0x4, fixed_abs, tag = 'smem constant byte address 0x4 - core index']
  #allocation1 [shape = 'u32[144,128]{1,0:T(1,128)}', space=vmem, size = 0x12000, scoped, tag = 'internal scratch']
  %s0 = inlined_call_operand.vmem [shape: bf16[32,896], index: 0, kind: input, shape index: {}]
  %s1 = inlined_call_operand.vmem [shape: bf16[896,512], index: 1, kind: input, shape index: {}]
  %s2 = inlined_call_operand.vmem [shape: f32[1,512], index: 2, kind: input, shape index: {}]
  %s3 = inlined_call_operand.vmem [shape: bf16[512,128], index: 3, kind: input, shape index: {}]
  %s4 = inlined_call_operand.vmem [shape: f32[1,128], index: 4, kind: input, shape index: {}]
  %s5 = inlined_call_operand.vmem [shape: bf16[128,128], index: 5, kind: input, shape index: {}]
  %s6 = inlined_call_operand.vmem [shape: f32[1,128], index: 6, kind: input, shape index: {}]
  %s7 = inlined_call_operand.vmem [shape: f32[32,128], index: 7, kind: output, shape index: {}]
  %s8 = sld [smem:[#allocation0]]
  $region38: #{mlp_forward.1} parent=0
    _
  %s10 = ssub.s32 1, %s8
  %s11 = scalar_select 0, %s10, %s8
  // Predicated region
  $region2: #{mlp_forward.1} parent=0 // pred_check
    _
  $region3: #{mlp_forward.1} parent=0 // pred_check_branch
    %13 = sbr.rel (0) target = $region5
  $region4: #{mlp_forward.1} parent=0 // pred_region
    _
  $region5: #{mlp_forward.1} parent=0 // pred_fallthru
    _
  // Predicated region
  $region6: #{mlp_forward.1} parent=0 // pred_check
    _
  $region7: #{mlp_forward.1} parent=0 // pred_check_branch
    %15 = sbr.rel (0) target = $region9
  $region8: #{mlp_forward.1} parent=0 // pred_region
    _
  $region9: #{mlp_forward.1} parent=0 // pred_fallthru
    _
  // Predicated region
  $region10: #{mlp_forward.1} parent=0 // pred_check
    _
  $region11: #{mlp_forward.1} parent=0 // pred_check_branch
    %17 = sbr.rel (0) target = $region13
  $region12: #{mlp_forward.1} parent=0 // pred_region
    _
  $region13: #{mlp_forward.1} parent=0 // pred_fallthru
    _
  // Predicated region
  $region14: #{mlp_forward.1} parent=0 // pred_check
    _
  $region15: #{mlp_forward.1} parent=0 // pred_check_branch
    %19 = sbr.rel (0) target = $region17
  $region16: #{mlp_forward.1} parent=0 // pred_region
    _
  $region17: #{mlp_forward.1} parent=0 // pred_fallthru
    _
  // Predicated region
  $region18: #{mlp_forward.1} parent=0 // pred_check
    _
  $region19: #{mlp_forward.1} parent=0 // pred_check_branch
    %21 = sbr.rel (0) target = $region21
  $region20: #{mlp_forward.1} parent=0 // pred_region
    _
  $region21: #{mlp_forward.1} parent=0 // pred_fallthru
    _
  // Predicated region
  $region22: #{mlp_forward.1} parent=0 // pred_check
    _
  $region23: #{mlp_forward.1} parent=0 // pred_check_branch
    %23 = sbr.rel (0) target = $region25
  $region24: #{mlp_forward.1} parent=0 // pred_region
    _
  $region25: #{mlp_forward.1} parent=0 // pred_fallthru
    _
  // Predicated region
  $region26: #{mlp_forward.1} parent=0 // pred_check
    _
  $region27: #{mlp_forward.1} parent=0 // pred_check_branch
    %25 = sbr.rel (0) target = $region29
  $region28: #{mlp_forward.1} parent=0 // pred_region
    _
  $region29: #{mlp_forward.1} parent=0 // pred_fallthru
    _
  %v27 = vld [vmem:[%s0] sm:$0xff]
  %v28 = vld [vmem:[%s0 + $0x8] sm:$0xff]
  %v29 = vld [vmem:[%s0 + $0x10] sm:$0xff]
  %v30 = vld [vmem:[%s0 + $0x18] sm:$0xf]
  %v31 = vld [vmem:[%s0 + $0x1c] sm:$0xff]
  %v32 = vld [vmem:[%s0 + $0x24] sm:$0xff]
  %v33 = vld [vmem:[%s0 + $0x2c] sm:$0xff]
  %v34 = vld [vmem:[%s0 + $0x34] sm:$0xf]
  %v35 = vld [vmem:[%s0 + $0x38] sm:$0xff]
  %v36 = vld [vmem:[%s0 + $0x40] sm:$0xff]
  %v37 = vld [vmem:[%s0 + $0x48] sm:$0xff]
  %v38 = vld [vmem:[%s0 + $0x50] sm:$0xf]
  %v39 = vld [vmem:[%s0 + $0x54] sm:$0xff]
  %v40 = vld [vmem:[%s0 + $0x5c] sm:$0xff]
  %v41 = vld [vmem:[%s0 + $0x64] sm:$0xff]
  %v42 = vld [vmem:[%s0 + $0x6c] sm:$0xf]
  %v43 = vld [vmem:[%s1] sm:$0xff]
  %v44 = vld [vmem:[%s1 + $0x8] sm:$0xff]
  %v45 = vld [vmem:[%s1 + $0x10] sm:$0xff]
  %v46 = vld [vmem:[%s1 + $0x18] sm:$0xff]
  %v47 = vld [vmem:[%s1 + $0x20] sm:$0xff]
  %v48 = vld [vmem:[%s1 + $0x28] sm:$0xff]
  %v49 = vld [vmem:[%s1 + $0x30] sm:$0xff]
  %v50 = vld [vmem:[%s1 + $0x38] sm:$0xff]
  %v51 = vld [vmem:[%s1 + $0x40] sm:$0xff]
  %v52 = vld [vmem:[%s1 + $0x48] sm:$0xff]
  %v53 = vld [vmem:[%s1 + $0x50] sm:$0xff]
  %v54 = vld [vmem:[%s1 + $0x58] sm:$0xff]
  %v55 = vld [vmem:[%s1 + $0x60] sm:$0xff]
  %v56 = vld [vmem:[%s1 + $0x68] sm:$0xff]
  %v57 = vld [vmem:[%s1 + $0x70] sm:$0xff]
  %v58 = vld [vmem:[%s1 + $0x78] sm:$0xff]
  %v59 = vld [vmem:[%s1 + $0x80] sm:$0xff]
  %v60 = vld [vmem:[%s1 + $0x88] sm:$0xff]
  %v61 = vld [vmem:[%s1 + $0x90] sm:$0xff]
  %v62 = vld [vmem:[%s1 + $0x98] sm:$0xff]
  %v63 = vld [vmem:[%s1 + $0xa0] sm:$0xff]
  %v64 = vld [vmem:[%s1 + $0xa8] sm:$0xff]
  %v65 = vld [vmem:[%s1 + $0xb0] sm:$0xff]
  %v66 = vld [vmem:[%s1 + $0xb8] sm:$0xff]
  %v67 = vld [vmem:[%s1 + $0xc0] sm:$0xff]
  %v68 = vld [vmem:[%s1 + $0xc8] sm:$0xff]
  %v69 = vld [vmem:[%s1 + $0xd0] sm:$0xff]
  %v70 = vld [vmem:[%s1 + $0xd8] sm:$0xff]
  %v71 = vld [vmem:[%s1 + $0xe0] sm:$0xff]
  %v72 = vld [vmem:[%s1 + $0xe8] sm:$0xff]
  %v73 = vld [vmem:[%s1 + $0xf0] sm:$0xff]
  %v74 = vld [vmem:[%s1 + $0xf8] sm:$0xff]
  %v75 = vld [vmem:[%s1 + $0x100] sm:$0xff]
  %v76 = vld [vmem:[%s1 + $0x108] sm:$0xff]
  %v77 = vld [vmem:[%s1 + $0x110] sm:$0xff]
  %v78 = vld [vmem:[%s1 + $0x118] sm:$0xff]
  %v79 = vld [vmem:[%s1 + $0x120] sm:$0xff]
  %v80 = vld [vmem:[%s1 + $0x128] sm:$0xff]
  %v81 = vld [vmem:[%s1 + $0x130] sm:$0xff]
  %v82 = vld [vmem:[%s1 + $0x138] sm:$0xff]
  %v83 = vld [vmem:[%s1 + $0x140] sm:$0xff]
  %v84 = vld [vmem:[%s1 + $0x148] sm:$0xff]
  %v85 = vld [vmem:[%s1 + $0x150] sm:$0xff]
  %v86 = vld [vmem:[%s1 + $0x158] sm:$0xff]
  %v87 = vld [vmem:[%s1 + $0x160] sm:$0xff]
  %v88 = vld [vmem:[%s1 + $0x168] sm:$0xff]
  %v89 = vld [vmem:[%s1 + $0x170] sm:$0xff]
  %v90 = vld [vmem:[%s1 + $0x178] sm:$0xff]
  %v91 = vld [vmem:[%s1 + $0x180] sm:$0xff]
  %v92 = vld [vmem:[%s1 + $0x188] sm:$0xff]
  %v93 = vld [vmem:[%s1 + $0x190] sm:$0xff]
  %v94 = vld [vmem:[%s1 + $0x198] sm:$0xff]
  %v95 = vld [vmem:[%s1 + $0x1a0] sm:$0xff]
  %v96 = vld [vmem:[%s1 + $0x1a8] sm:$0xff]
  %v97 = vld [vmem:[%s1 + $0x1b0] sm:$0xff]
  %v98 = vld [vmem:[%s1 + $0x1b8] sm:$0xff]
  %v99 = vld [vmem:[%s1 + $0x1c0] sm:$0xff]
  %v100 = vld [vmem:[%s1 + $0x1c8] sm:$0xff]
  %v101 = vld [vmem:[%s1 + $0x1d0] sm:$0xff]
  %v102 = vld [vmem:[%s1 + $0x1d8] sm:$0xff]
  %v103 = vld [vmem:[%s1 + $0x1e0] sm:$0xff]
  %v104 = vld [vmem:[%s1 + $0x1e8] sm:$0xff]
  %v105 = vld [vmem:[%s1 + $0x1f0] sm:$0xff]
  %v106 = vld [vmem:[%s1 + $0x1f8] sm:$0xff]
  %v107 = vld [vmem:[%s1 + $0x200] sm:$0xff]
  %v108 = vld [vmem:[%s1 + $0x208] sm:$0xff]
  %v109 = vld [vmem:[%s1 + $0x210] sm:$0xff]
  %v110 = vld [vmem:[%s1 + $0x218] sm:$0xff]
  %v111 = vld [vmem:[%s1 + $0x220] sm:$0xff]
  %v112 = vld [vmem:[%s1 + $0x228] sm:$0xff]
  %v113 = vld [vmem:[%s1 + $0x230] sm:$0xff]
  %v114 = vld [vmem:[%s1 + $0x238] sm:$0xff]
  %v115 = vld [vmem:[%s1 + $0x240] sm:$0xff]
  %v116 = vld [vmem:[%s1 + $0x248] sm:$0xff]
  %v117 = vld [vmem:[%s1 + $0x250] sm:$0xff]
  %v118 = vld [vmem:[%s1 + $0x258] sm:$0xff]
  %v119 = vld [vmem:[%s1 + $0x260] sm:$0xff]
  %v120 = vld [vmem:[%s1 + $0x268] sm:$0xff]
  %v121 = vld [vmem:[%s1 + $0x270] sm:$0xff]
  %v122 = vld [vmem:[%s1 + $0x278] sm:$0xff]
  %v123 = vld [vmem:[%s1 + $0x280] sm:$0xff]
  %v124 = vld [vmem:[%s1 + $0x288] sm:$0xff]
  %v125 = vld [vmem:[%s1 + $0x290] sm:$0xff]
  %v126 = vld [vmem:[%s1 + $0x298] sm:$0xff]
  %v127 = vld [vmem:[%s1 + $0x2a0] sm:$0xff]
  %v128 = vld [vmem:[%s1 + $0x2a8] sm:$0xff]
  %v129 = vld [vmem:[%s1 + $0x2b0] sm:$0xff]
  %v130 = vld [vmem:[%s1 + $0x2b8] sm:$0xff]
  %v131 = vld [vmem:[%s1 + $0x2c0] sm:$0xff]
  %v132 = vld [vmem:[%s1 + $0x2c8] sm:$0xff]
  %v133 = vld [vmem:[%s1 + $0x2d0] sm:$0xff]
  %v134 = vld [vmem:[%s1 + $0x2d8] sm:$0xff]
  %v135 = vld [vmem:[%s1 + $0x2e0] sm:$0xff]
  %v136 = vld [vmem:[%s1 + $0x2e8] sm:$0xff]
  %v137 = vld [vmem:[%s1 + $0x2f0] sm:$0xff]
  %v138 = vld [vmem:[%s1 + $0x2f8] sm:$0xff]
  %v139 = vld [vmem:[%s1 + $0x300] sm:$0xff]
  %v140 = vld [vmem:[%s1 + $0x308] sm:$0xff]
  %v141 = vld [vmem:[%s1 + $0x310] sm:$0xff]
  %v142 = vld [vmem:[%s1 + $0x318] sm:$0xff]
  %v143 = vld [vmem:[%s1 + $0x320] sm:$0xff]
  %v144 = vld [vmem:[%s1 + $0x328] sm:$0xff]
  %v145 = vld [vmem:[%s1 + $0x330] sm:$0xff]
  %v146 = vld [vmem:[%s1 + $0x338] sm:$0xff]
  %v147 = vld [vmem:[%s1 + $0x340] sm:$0xff]
  %v148 = vld [vmem:[%s1 + $0x348] sm:$0xff]
  %v149 = vld [vmem:[%s1 + $0x350] sm:$0xff]
  %v150 = vld [vmem:[%s1 + $0x358] sm:$0xff]
  %v151 = vld [vmem:[%s1 + $0x360] sm:$0xff]
  %v152 = vld [vmem:[%s1 + $0x368] sm:$0xff]
  %v153 = vld [vmem:[%s1 + $0x370] sm:$0xff]
  %v154 = vld [vmem:[%s1 + $0x378] sm:$0xff]
  %v155 = vld [vmem:[%s1 + $0x380] sm:$0xff]
  %v156 = vld [vmem:[%s1 + $0x388] sm:$0xff]
  %v157 = vld [vmem:[%s1 + $0x390] sm:$0xff]
  %v158 = vld [vmem:[%s1 + $0x398] sm:$0xff]
  %v159 = vld [vmem:[%s1 + $0x3a0] sm:$0xff]
  %v160 = vld [vmem:[%s1 + $0x3a8] sm:$0xff]
  %v161 = vld [vmem:[%s1 + $0x3b0] sm:$0xff]
  %v162 = vld [vmem:[%s1 + $0x3b8] sm:$0xff]
  %v163 = vld [vmem:[%s1 + $0x3c0] sm:$0xff]
  %v164 = vld [vmem:[%s1 + $0x3c8] sm:$0xff]
  %v165 = vld [vmem:[%s1 + $0x3d0] sm:$0xff]
  %v166 = vld [vmem:[%s1 + $0x3d8] sm:$0xff]
  %v167 = vld [vmem:[%s1 + $0x3e0] sm:$0xff]
  %v168 = vld [vmem:[%s1 + $0x3e8] sm:$0xff]
  %v169 = vld [vmem:[%s1 + $0x3f0] sm:$0xff]
  %v170 = vld [vmem:[%s1 + $0x3f8] sm:$0xff]
  %v171 = vld [vmem:[%s1 + $0x400] sm:$0xff]
  %v172 = vld [vmem:[%s1 + $0x408] sm:$0xff]
  %v173 = vld [vmem:[%s1 + $0x410] sm:$0xff]
  %v174 = vld [vmem:[%s1 + $0x418] sm:$0xff]
  %v175 = vld [vmem:[%s1 + $0x420] sm:$0xff]
  %v176 = vld [vmem:[%s1 + $0x428] sm:$0xff]
  %v177 = vld [vmem:[%s1 + $0x430] sm:$0xff]
  %v178 = vld [vmem:[%s1 + $0x438] sm:$0xff]
  %v179 = vld [vmem:[%s1 + $0x440] sm:$0xff]
  %v180 = vld [vmem:[%s1 + $0x448] sm:$0xff]
  %v181 = vld [vmem:[%s1 + $0x450] sm:$0xff]
  %v182 = vld [vmem:[%s1 + $0x458] sm:$0xff]
  %v183 = vld [vmem:[%s1 + $0x460] sm:$0xff]
  %v184 = vld [vmem:[%s1 + $0x468] sm:$0xff]
  %v185 = vld [vmem:[%s1 + $0x470] sm:$0xff]
  %v186 = vld [vmem:[%s1 + $0x478] sm:$0xff]
  %v187 = vld [vmem:[%s1 + $0x480] sm:$0xff]
  %v188 = vld [vmem:[%s1 + $0x488] sm:$0xff]
  %v189 = vld [vmem:[%s1 + $0x490] sm:$0xff]
  %v190 = vld [vmem:[%s1 + $0x498] sm:$0xff]
  %v191 = vld [vmem:[%s1 + $0x4a0] sm:$0xff]
  %v192 = vld [vmem:[%s1 + $0x4a8] sm:$0xff]
  %v193 = vld [vmem:[%s1 + $0x4b0] sm:$0xff]
  %v194 = vld [vmem:[%s1 + $0x4b8] sm:$0xff]
  %v195 = vld [vmem:[%s1 + $0x4c0] sm:$0xff]
  %v196 = vld [vmem:[%s1 + $0x4c8] sm:$0xff]
  %v197 = vld [vmem:[%s1 + $0x4d0] sm:$0xff]
  %v198 = vld [vmem:[%s1 + $0x4d8] sm:$0xff]
  %v199 = vld [vmem:[%s1 + $0x4e0] sm:$0xff]
  %v200 = vld [vmem:[%s1 + $0x4e8] sm:$0xff]
  %v201 = vld [vmem:[%s1 + $0x4f0] sm:$0xff]
  %v202 = vld [vmem:[%s1 + $0x4f8] sm:$0xff]
  %v203 = vld [vmem:[%s1 + $0x500] sm:$0xff]
  %v204 = vld [vmem:[%s1 + $0x508] sm:$0xff]
  %v205 = vld [vmem:[%s1 + $0x510] sm:$0xff]
  %v206 = vld [vmem:[%s1 + $0x518] sm:$0xff]
  %v207 = vld [vmem:[%s1 + $0x520] sm:$0xff]
  %v208 = vld [vmem:[%s1 + $0x528] sm:$0xff]
  %v209 = vld [vmem:[%s1 + $0x530] sm:$0xff]
  %v210 = vld [vmem:[%s1 + $0x538] sm:$0xff]
  %v211 = vld [vmem:[%s1 + $0x540] sm:$0xff]
  %v212 = vld [vmem:[%s1 + $0x548] sm:$0xff]
  %v213 = vld [vmem:[%s1 + $0x550] sm:$0xff]
  %v214 = vld [vmem:[%s1 + $0x558] sm:$0xff]
  %v215 = vld [vmem:[%s1 + $0x560] sm:$0xff]
  %v216 = vld [vmem:[%s1 + $0x568] sm:$0xff]
  %v217 = vld [vmem:[%s1 + $0x570] sm:$0xff]
  %v218 = vld [vmem:[%s1 + $0x578] sm:$0xff]
  %v219 = vld [vmem:[%s1 + $0x580] sm:$0xff]
  %v220 = vld [vmem:[%s1 + $0x588] sm:$0xff]
  %v221 = vld [vmem:[%s1 + $0x590] sm:$0xff]
  %v222 = vld [vmem:[%s1 + $0x598] sm:$0xff]
  %v223 = vld [vmem:[%s1 + $0x5a0] sm:$0xff]
  %v224 = vld [vmem:[%s1 + $0x5a8] sm:$0xff]
  %v225 = vld [vmem:[%s1 + $0x5b0] sm:$0xff]
  %v226 = vld [vmem:[%s1 + $0x5b8] sm:$0xff]
  %v227 = vld [vmem:[%s1 + $0x5c0] sm:$0xff]
  %v228 = vld [vmem:[%s1 + $0x5c8] sm:$0xff]
  %v229 = vld [vmem:[%s1 + $0x5d0] sm:$0xff]
  %v230 = vld [vmem:[%s1 + $0x5d8] sm:$0xff]
  %v231 = vld [vmem:[%s1 + $0x5e0] sm:$0xff]
  %v232 = vld [vmem:[%s1 + $0x5e8] sm:$0xff]
  %v233 = vld [vmem:[%s1 + $0x5f0] sm:$0xff]
  %v234 = vld [vmem:[%s1 + $0x5f8] sm:$0xff]
  %v235 = vld [vmem:[%s1 + $0x600] sm:$0xff]
  %v236 = vld [vmem:[%s1 + $0x608] sm:$0xff]
  %v237 = vld [vmem:[%s1 + $0x610] sm:$0xff]
  %v238 = vld [vmem:[%s1 + $0x618] sm:$0xff]
  %v239 = vld [vmem:[%s1 + $0x620] sm:$0xff]
  %v240 = vld [vmem:[%s1 + $0x628] sm:$0xff]
  %v241 = vld [vmem:[%s1 + $0x630] sm:$0xff]
  %v242 = vld [vmem:[%s1 + $0x638] sm:$0xff]
  %v243 = vld [vmem:[%s1 + $0x640] sm:$0xff]
  %v244 = vld [vmem:[%s1 + $0x648] sm:$0xff]
  %v245 = vld [vmem:[%s1 + $0x650] sm:$0xff]
  %v246 = vld [vmem:[%s1 + $0x658] sm:$0xff]
  %v247 = vld [vmem:[%s1 + $0x660] sm:$0xff]
  %v248 = vld [vmem:[%s1 + $0x668] sm:$0xff]
  %v249 = vld [vmem:[%s1 + $0x670] sm:$0xff]
  %v250 = vld [vmem:[%s1 + $0x678] sm:$0xff]
  %v251 = vld [vmem:[%s1 + $0x680] sm:$0xff]
  %v252 = vld [vmem:[%s1 + $0x688] sm:$0xff]
  %v253 = vld [vmem:[%s1 + $0x690] sm:$0xff]
  %v254 = vld [vmem:[%s1 + $0x698] sm:$0xff]
  %v255 = vld [vmem:[%s1 + $0x6a0] sm:$0xff]
  %v256 = vld [vmem:[%s1 + $0x6a8] sm:$0xff]
  %v257 = vld [vmem:[%s1 + $0x6b0] sm:$0xff]
  %v258 = vld [vmem:[%s1 + $0x6b8] sm:$0xff]
  %v259 = vld [vmem:[%s1 + $0x6c0] sm:$0xff]
  %v260 = vld [vmem:[%s1 + $0x6c8] sm:$0xff]
  %v261 = vld [vmem:[%s1 + $0x6d0] sm:$0xff]
  %v262 = vld [vmem:[%s1 + $0x6d8] sm:$0xff]
  %v263 = vld [vmem:[%s1 + $0x6e0] sm:$0xff]
  %v264 = vld [vmem:[%s1 + $0x6e8] sm:$0xff]
  %v265 = vld [vmem:[%s1 + $0x6f0] sm:$0xff]
  %v266 = vld [vmem:[%s1 + $0x6f8] sm:$0xff]
  %v267 = vld [vmem:[%s2] sm:$0xf]
  %v269 = vlaneseq
  %v270 = vshrl.u32 %v269, 7
  %v271 = vsub.s32 0, %v270
  %v272 = vrot.slane %v267, %v271
  %v273 = vlaneseq
  %v274 = vshrl.u32 %v273, 7
  %v275 = vsub.s32 1, %v274
  %v276 = vrot.slane %v267, %v275
  %v277 = vlaneseq
  %v278 = vshrl.u32 %v277, 7
  %v279 = vsub.s32 2, %v278
  %v280 = vrot.slane %v267, %v279
  %v281 = vlaneseq
  %v282 = vshrl.u32 %v281, 7
  %v283 = vsub.s32 3, %v282
  %v284 = vrot.slane %v267, %v283
  %v305 = vunpack.c.l.b16 %v27
  %v306 = vunpack.c.h.b16 %v27
  %v307 = vunpack.c.l.b16 %v28
  %v308 = vunpack.c.h.b16 %v28
  %v309 = vunpack.c.l.b16 %v29
  %v310 = vunpack.c.h.b16 %v29
  %v311 = vunpack.c.l.b16 %v30
  %v312 = vunpack.c.l.b16 %v31
  %v313 = vunpack.c.h.b16 %v31
  %v314 = vunpack.c.l.b16 %v32
  %v315 = vunpack.c.h.b16 %v32
  %v316 = vunpack.c.l.b16 %v33
  %v317 = vunpack.c.h.b16 %v33
  %v318 = vunpack.c.l.b16 %v34
  %v319 = vunpack.c.l.b16 %v35
  %v320 = vunpack.c.h.b16 %v35
  %v321 = vunpack.c.l.b16 %v36
  %v322 = vunpack.c.h.b16 %v36
  %v323 = vunpack.c.l.b16 %v37
  %v324 = vunpack.c.h.b16 %v37
  %v325 = vunpack.c.l.b16 %v38
  %v326 = vunpack.c.l.b16 %v39
  %v327 = vunpack.c.h.b16 %v39
  %v328 = vunpack.c.l.b16 %v40
  %v329 = vunpack.c.h.b16 %v40
  %v330 = vunpack.c.l.b16 %v41
  %v331 = vunpack.c.h.b16 %v41
  %v332 = vunpack.c.l.b16 %v42
  %v333 = vpack.c.b16 %v312, %v305
  %v334 = vpack.c.b16 %v313, %v306
  %v335 = vpack.c.b16 %v314, %v307
  %v336 = vpack.c.b16 %v315, %v308
  %v337 = vpack.c.b16 %v316, %v309
  %v338 = vpack.c.b16 %v317, %v310
  %v339 = vpack.c.b16 %v318, %v311
  %v340 = vpack.c.b16 %v326, %v319
  %v341 = vpack.c.b16 %v327, %v320
  %v342 = vpack.c.b16 %v328, %v321
  %v343 = vpack.c.b16 %v329, %v322
  %v344 = vpack.c.b16 %v330, %v323
  %v345 = vpack.c.b16 %v331, %v324
  %v346 = vpack.c.b16 %v332, %v325
  %v585 = vunpack.c.l.b16 %v43
  %v586 = vunpack.c.h.b16 %v43
  %v587 = vunpack.c.l.b16 %v44
  %v588 = vunpack.c.h.b16 %v44
  %v589 = vunpack.c.l.b16 %v45
  %v590 = vunpack.c.h.b16 %v45
  %v591 = vunpack.c.l.b16 %v46
  %v592 = vunpack.c.h.b16 %v46
  %v593 = vunpack.c.l.b16 %v47
  %v594 = vunpack.c.h.b16 %v47
  %v595 = vunpack.c.l.b16 %v48
  %v596 = vunpack.c.h.b16 %v48
  %v597 = vunpack.c.l.b16 %v49
  %v598 = vunpack.c.h.b16 %v49
  %v599 = vunpack.c.l.b16 %v50
  %v600 = vunpack.c.h.b16 %v50
  %v601 = vunpack.c.l.b16 %v51
  %v602 = vunpack.c.h.b16 %v51
  %v603 = vunpack.c.l.b16 %v52
  %v604 = vunpack.c.h.b16 %v52
  %v605 = vunpack.c.l.b16 %v53
  %v606 = vunpack.c.h.b16 %v53
  %v607 = vunpack.c.l.b16 %v54
  %v608 = vunpack.c.h.b16 %v54
  %v609 = vunpack.c.l.b16 %v55
  %v610 = vunpack.c.h.b16 %v55
  %v611 = vunpack.c.l.b16 %v56
  %v612 = vunpack.c.h.b16 %v56
  %v613 = vunpack.c.l.b16 %v57
  %v614 = vunpack.c.h.b16 %v57
  %v615 = vunpack.c.l.b16 %v58
  %v616 = vunpack.c.h.b16 %v58
  %v617 = vunpack.c.l.b16 %v59
  %v618 = vunpack.c.h.b16 %v59
  %v619 = vunpack.c.l.b16 %v60
  %v620 = vunpack.c.h.b16 %v60
  %v621 = vunpack.c.l.b16 %v61
  %v622 = vunpack.c.h.b16 %v61
  %v623 = vunpack.c.l.b16 %v62
  %v624 = vunpack.c.h.b16 %v62
  %v625 = vunpack.c.l.b16 %v63
  %v626 = vunpack.c.h.b16 %v63
  %v627 = vunpack.c.l.b16 %v64
  %v628 = vunpack.c.h.b16 %v64
  %v629 = vunpack.c.l.b16 %v65
  %v630 = vunpack.c.h.b16 %v65
  %v631 = vunpack.c.l.b16 %v66
  %v632 = vunpack.c.h.b16 %v66
  %v633 = vunpack.c.l.b16 %v67
  %v634 = vunpack.c.h.b16 %v67
  %v635 = vunpack.c.l.b16 %v68
  %v636 = vunpack.c.h.b16 %v68
  %v637 = vunpack.c.l.b16 %v69
  %v638 = vunpack.c.h.b16 %v69
  %v639 = vunpack.c.l.b16 %v70
  %v640 = vunpack.c.h.b16 %v70
  %v641 = vunpack.c.l.b16 %v71
  %v642 = vunpack.c.h.b16 %v71
  %v643 = vunpack.c.l.b16 %v72
  %v644 = vunpack.c.h.b16 %v72
  %v645 = vunpack.c.l.b16 %v73
  %v646 = vunpack.c.h.b16 %v73
  %v647 = vunpack.c.l.b16 %v74
  %v648 = vunpack.c.h.b16 %v74
  %v649 = vunpack.c.l.b16 %v75
  %v650 = vunpack.c.h.b16 %v75
  %v651 = vunpack.c.l.b16 %v76
  %v652 = vunpack.c.h.b16 %v76
  %v653 = vunpack.c.l.b16 %v77
  %v654 = vunpack.c.h.b16 %v77
  %v655 = vunpack.c.l.b16 %v78
  %v656 = vunpack.c.h.b16 %v78
  %v657 = vunpack.c.l.b16 %v79
  %v658 = vunpack.c.h.b16 %v79
  %v659 = vunpack.c.l.b16 %v80
  %v660 = vunpack.c.h.b16 %v80
  %v661 = vunpack.c.l.b16 %v81
  %v662 = vunpack.c.h.b16 %v81
  %v663 = vunpack.c.l.b16 %v82
  %v664 = vunpack.c.h.b16 %v82
  %v665 = vunpack.c.l.b16 %v83
  %v666 = vunpack.c.h.b16 %v83
  %v667 = vunpack.c.l.b16 %v84
  %v668 = vunpack.c.h.b16 %v84
  %v669 = vunpack.c.l.b16 %v85
  %v670 = vunpack.c.h.b16 %v85
  %v671 = vunpack.c.l.b16 %v86
  %v672 = vunpack.c.h.b16 %v86
  %v673 = vunpack.c.l.b16 %v87
  %v674 = vunpack.c.h.b16 %v87
  %v675 = vunpack.c.l.b16 %v88
  %v676 = vunpack.c.h.b16 %v88
  %v677 = vunpack.c.l.b16 %v89
  %v678 = vunpack.c.h.b16 %v89
  %v679 = vunpack.c.l.b16 %v90
  %v680 = vunpack.c.h.b16 %v90
  %v681 = vunpack.c.l.b16 %v91
  %v682 = vunpack.c.h.b16 %v91
  %v683 = vunpack.c.l.b16 %v92
  %v684 = vunpack.c.h.b16 %v92
  %v685 = vunpack.c.l.b16 %v93
  %v686 = vunpack.c.h.b16 %v93
  %v687 = vunpack.c.l.b16 %v94
  %v688 = vunpack.c.h.b16 %v94
  %v689 = vunpack.c.l.b16 %v95
  %v690 = vunpack.c.h.b16 %v95
  %v691 = vunpack.c.l.b16 %v96
  %v692 = vunpack.c.h.b16 %v96
  %v693 = vunpack.c.l.b16 %v97
  %v694 = vunpack.c.h.b16 %v97
  %v695 = vunpack.c.l.b16 %v98
  %v696 = vunpack.c.h.b16 %v98
  %v697 = vunpack.c.l.b16 %v99
  %v698 = vunpack.c.h.b16 %v99
  %v699 = vunpack.c.l.b16 %v100
  %v700 = vunpack.c.h.b16 %v100
  %v701 = vunpack.c.l.b16 %v101
  %v702 = vunpack.c.h.b16 %v101
  %v703 = vunpack.c.l.b16 %v102
  %v704 = vunpack.c.h.b16 %v102
  %v705 = vunpack.c.l.b16 %v103
  %v706 = vunpack.c.h.b16 %v103
  %v707 = vunpack.c.l.b16 %v104
  %v708 = vunpack.c.h.b16 %v104
  %v709 = vunpack.c.l.b16 %v105
  %v710 = vunpack.c.h.b16 %v105
  %v711 = vunpack.c.l.b16 %v106
  %v712 = vunpack.c.h.b16 %v106
  %v713 = vunpack.c.l.b16 %v107
  %v714 = vunpack.c.h.b16 %v107
  %v715 = vunpack.c.l.b16 %v108
  %v716 = vunpack.c.h.b16 %v108
  %v717 = vunpack.c.l.b16 %v109
  %v718 = vunpack.c.h.b16 %v109
  %v719 = vunpack.c.l.b16 %v110
  %v720 = vunpack.c.h.b16 %v110
  %v721 = vunpack.c.l.b16 %v111
  %v722 = vunpack.c.h.b16 %v111
  %v723 = vunpack.c.l.b16 %v112
  %v724 = vunpack.c.h.b16 %v112
  %v725 = vunpack.c.l.b16 %v113
  %v726 = vunpack.c.h.b16 %v113
  %v727 = vunpack.c.l.b16 %v114
  %v728 = vunpack.c.h.b16 %v114
  %v729 = vunpack.c.l.b16 %v115
  %v730 = vunpack.c.h.b16 %v115
  %v731 = vunpack.c.l.b16 %v116
  %v732 = vunpack.c.h.b16 %v116
  %v733 = vunpack.c.l.b16 %v117
  %v734 = vunpack.c.h.b16 %v117
  %v735 = vunpack.c.l.b16 %v118
  %v736 = vunpack.c.h.b16 %v118
  %v737 = vunpack.c.l.b16 %v119
  %v738 = vunpack.c.h.b16 %v119
  %v739 = vunpack.c.l.b16 %v120
  %v740 = vunpack.c.h.b16 %v120
  %v741 = vunpack.c.l.b16 %v121
  %v742 = vunpack.c.h.b16 %v121
  %v743 = vunpack.c.l.b16 %v122
  %v744 = vunpack.c.h.b16 %v122
  %v745 = vunpack.c.l.b16 %v123
  %v746 = vunpack.c.h.b16 %v123
  %v747 = vunpack.c.l.b16 %v124
  %v748 = vunpack.c.h.b16 %v124
  %v749 = vunpack.c.l.b16 %v125
  %v750 = vunpack.c.h.b16 %v125
  %v751 = vunpack.c.l.b16 %v126
  %v752 = vunpack.c.h.b16 %v126
  %v753 = vunpack.c.l.b16 %v127
  %v754 = vunpack.c.h.b16 %v127
  %v755 = vunpack.c.l.b16 %v128
  %v756 = vunpack.c.h.b16 %v128
  %v757 = vunpack.c.l.b16 %v129
  %v758 = vunpack.c.h.b16 %v129
  %v759 = vunpack.c.l.b16 %v130
  %v760 = vunpack.c.h.b16 %v130
  %v761 = vunpack.c.l.b16 %v131
  %v762 = vunpack.c.h.b16 %v131
  %v763 = vunpack.c.l.b16 %v132
  %v764 = vunpack.c.h.b16 %v132
  %v765 = vunpack.c.l.b16 %v133
  %v766 = vunpack.c.h.b16 %v133
  %v767 = vunpack.c.l.b16 %v134
  %v768 = vunpack.c.h.b16 %v134
  %v769 = vunpack.c.l.b16 %v135
  %v770 = vunpack.c.h.b16 %v135
  %v771 = vunpack.c.l.b16 %v136
  %v772 = vunpack.c.h.b16 %v136
  %v773 = vunpack.c.l.b16 %v137
  %v774 = vunpack.c.h.b16 %v137
  %v775 = vunpack.c.l.b16 %v138
  %v776 = vunpack.c.h.b16 %v138
  %v777 = vunpack.c.l.b16 %v139
  %v778 = vunpack.c.h.b16 %v139
  %v779 = vunpack.c.l.b16 %v140
  %v780 = vunpack.c.h.b16 %v140
  %v781 = vunpack.c.l.b16 %v141
  %v782 = vunpack.c.h.b16 %v141
  %v783 = vunpack.c.l.b16 %v142
  %v784 = vunpack.c.h.b16 %v142
  %v785 = vunpack.c.l.b16 %v143
  %v786 = vunpack.c.h.b16 %v143
  %v787 = vunpack.c.l.b16 %v144
  %v788 = vunpack.c.h.b16 %v144
  %v789 = vunpack.c.l.b16 %v145
  %v790 = vunpack.c.h.b16 %v145
  %v791 = vunpack.c.l.b16 %v146
  %v792 = vunpack.c.h.b16 %v146
  %v793 = vunpack.c.l.b16 %v147
  %v794 = vunpack.c.h.b16 %v147
  %v795 = vunpack.c.l.b16 %v148
  %v796 = vunpack.c.h.b16 %v148
  %v797 = vunpack.c.l.b16 %v149
  %v798 = vunpack.c.h.b16 %v149
  %v799 = vunpack.c.l.b16 %v150
  %v800 = vunpack.c.h.b16 %v150
  %v801 = vunpack.c.l.b16 %v151
  %v802 = vunpack.c.h.b16 %v151
  %v803 = vunpack.c.l.b16 %v152
  %v804 = vunpack.c.h.b16 %v152
  %v805 = vunpack.c.l.b16 %v153
  %v806 = vunpack.c.h.b16 %v153
  %v807 = vunpack.c.l.b16 %v154
  %v808 = vunpack.c.h.b16 %v154
  %v809 = vunpack.c.l.b16 %v155
  %v810 = vunpack.c.h.b16 %v155
  %v811 = vunpack.c.l.b16 %v156
  %v812 = vunpack.c.h.b16 %v156
  %v813 = vunpack.c.l.b16 %v157
  %v814 = vunpack.c.h.b16 %v157
  %v815 = vunpack.c.l.b16 %v158
  %v816 = vunpack.c.h.b16 %v158
  %v817 = vunpack.c.l.b16 %v159
  %v818 = vunpack.c.h.b16 %v159
  %v819 = vunpack.c.l.b16 %v160
  %v820 = vunpack.c.h.b16 %v160
  %v821 = vunpack.c.l.b16 %v161
  %v822 = vunpack.c.h.b16 %v161
  %v823 = vunpack.c.l.b16 %v162
  %v824 = vunpack.c.h.b16 %v162
  %v825 = vunpack.c.l.b16 %v163
  %v826 = vunpack.c.h.b16 %v163
  %v827 = vunpack.c.l.b16 %v164
  %v828 = vunpack.c.h.b16 %v164
  %v829 = vunpack.c.l.b16 %v165
  %v830 = vunpack.c.h.b16 %v165
  %v831 = vunpack.c.l.b16 %v166
  %v832 = vunpack.c.h.b16 %v166
  %v833 = vunpack.c.l.b16 %v167
  %v834 = vunpack.c.h.b16 %v167
  %v835 = vunpack.c.l.b16 %v168
  %v836 = vunpack.c.h.b16 %v168
  %v837 = vunpack.c.l.b16 %v169
  %v838 = vunpack.c.h.b16 %v169
  %v839 = vunpack.c.l.b16 %v170
  %v840 = vunpack.c.h.b16 %v170
  %v841 = vunpack.c.l.b16 %v171
  %v842 = vunpack.c.h.b16 %v171
  %v843 = vunpack.c.l.b16 %v172
  %v844 = vunpack.c.h.b16 %v172
  %v845 = vunpack.c.l.b16 %v173
  %v846 = vunpack.c.h.b16 %v173
  %v847 = vunpack.c.l.b16 %v174
  %v848 = vunpack.c.h.b16 %v174
  %v849 = vunpack.c.l.b16 %v175
  %v850 = vunpack.c.h.b16 %v175
  %v851 = vunpack.c.l.b16 %v176
  %v852 = vunpack.c.h.b16 %v176
  %v853 = vunpack.c.l.b16 %v177
  %v854 = vunpack.c.h.b16 %v177
  %v855 = vunpack.c.l.b16 %v178
  %v856 = vunpack.c.h.b16 %v178
  %v857 = vunpack.c.l.b16 %v179
  %v858 = vunpack.c.h.b16 %v179
  %v859 = vunpack.c.l.b16 %v180
  %v860 = vunpack.c.h.b16 %v180
  %v861 = vunpack.c.l.b16 %v181
  %v862 = vunpack.c.h.b16 %v181
  %v863 = vunpack.c.l.b16 %v182
  %v864 = vunpack.c.h.b16 %v182
  %v865 = vunpack.c.l.b16 %v183
  %v866 = vunpack.c.h.b16 %v183
  %v867 = vunpack.c.l.b16 %v184
  %v868 = vunpack.c.h.b16 %v184
  %v869 = vunpack.c.l.b16 %v185
  %v870 = vunpack.c.h.b16 %v185
  %v871 = vunpack.c.l.b16 %v186
  %v872 = vunpack.c.h.b16 %v186
  %v873 = vunpack.c.l.b16 %v187
  %v874 = vunpack.c.h.b16 %v187
  %v875 = vunpack.c.l.b16 %v188
  %v876 = vunpack.c.h.b16 %v188
  %v877 = vunpack.c.l.b16 %v189
  %v878 = vunpack.c.h.b16 %v189
  %v879 = vunpack.c.l.b16 %v190
  %v880 = vunpack.c.h.b16 %v190
  %v881 = vunpack.c.l.b16 %v191
  %v882 = vunpack.c.h.b16 %v191
  %v883 = vunpack.c.l.b16 %v192
  %v884 = vunpack.c.h.b16 %v192
  %v885 = vunpack.c.l.b16 %v193
  %v886 = vunpack.c.h.b16 %v193
  %v887 = vunpack.c.l.b16 %v194
  %v888 = vunpack.c.h.b16 %v194
  %v889 = vunpack.c.l.b16 %v195
  %v890 = vunpack.c.h.b16 %v195
  %v891 = vunpack.c.l.b16 %v196
  %v892 = vunpack.c.h.b16 %v196
  %v893 = vunpack.c.l.b16 %v197
  %v894 = vunpack.c.h.b16 %v197
  %v895 = vunpack.c.l.b16 %v198
  %v896 = vunpack.c.h.b16 %v198
  %v897 = vunpack.c.l.b16 %v199
  %v898 = vunpack.c.h.b16 %v199
  %v899 = vunpack.c.l.b16 %v200
  %v900 = vunpack.c.h.b16 %v200
  %v901 = vunpack.c.l.b16 %v201
  %v902 = vunpack.c.h.b16 %v201
  %v903 = vunpack.c.l.b16 %v202
  %v904 = vunpack.c.h.b16 %v202
  %v905 = vunpack.c.l.b16 %v203
  %v906 = vunpack.c.h.b16 %v203
  %v907 = vunpack.c.l.b16 %v204
  %v908 = vunpack.c.h.b16 %v204
  %v909 = vunpack.c.l.b16 %v205
  %v910 = vunpack.c.h.b16 %v205
  %v911 = vunpack.c.l.b16 %v206
  %v912 = vunpack.c.h.b16 %v206
  %v913 = vunpack.c.l.b16 %v207
  %v914 = vunpack.c.h.b16 %v207
  %v915 = vunpack.c.l.b16 %v208
  %v916 = vunpack.c.h.b16 %v208
  %v917 = vunpack.c.l.b16 %v209
  %v918 = vunpack.c.h.b16 %v209
  %v919 = vunpack.c.l.b16 %v210
  %v920 = vunpack.c.h.b16 %v210
  %v921 = vunpack.c.l.b16 %v211
  %v922 = vunpack.c.h.b16 %v211
  %v923 = vunpack.c.l.b16 %v212
  %v924 = vunpack.c.h.b16 %v212
  %v925 = vunpack.c.l.b16 %v213
  %v926 = vunpack.c.h.b16 %v213
  %v927 = vunpack.c.l.b16 %v214
  %v928 = vunpack.c.h.b16 %v214
  %v929 = vunpack.c.l.b16 %v215
  %v930 = vunpack.c.h.b16 %v215
  %v931 = vunpack.c.l.b16 %v216
  %v932 = vunpack.c.h.b16 %v216
  %v933 = vunpack.c.l.b16 %v217
  %v934 = vunpack.c.h.b16 %v217
  %v935 = vunpack.c.l.b16 %v218
  %v936 = vunpack.c.h.b16 %v218
  %v937 = vunpack.c.l.b16 %v219
  %v938 = vunpack.c.h.b16 %v219
  %v939 = vunpack.c.l.b16 %v220
  %v940 = vunpack.c.h.b16 %v220
  %v941 = vunpack.c.l.b16 %v221
  %v942 = vunpack.c.h.b16 %v221
  %v943 = vunpack.c.l.b16 %v222
  %v944 = vunpack.c.h.b16 %v222
  %v945 = vunpack.c.l.b16 %v223
  %v946 = vunpack.c.h.b16 %v223
  %v947 = vunpack.c.l.b16 %v224
  %v948 = vunpack.c.h.b16 %v224
  %v949 = vunpack.c.l.b16 %v225
  %v950 = vunpack.c.h.b16 %v225
  %v951 = vunpack.c.l.b16 %v226
  %v952 = vunpack.c.h.b16 %v226
  %v953 = vunpack.c.l.b16 %v227
  %v954 = vunpack.c.h.b16 %v227
  %v955 = vunpack.c.l.b16 %v228
  %v956 = vunpack.c.h.b16 %v228
  %v957 = vunpack.c.l.b16 %v229
  %v958 = vunpack.c.h.b16 %v229
  %v959 = vunpack.c.l.b16 %v230
  %v960 = vunpack.c.h.b16 %v230
  %v961 = vunpack.c.l.b16 %v231
  %v962 = vunpack.c.h.b16 %v231
  %v963 = vunpack.c.l.b16 %v232
  %v964 = vunpack.c.h.b16 %v232
  %v965 = vunpack.c.l.b16 %v233
  %v966 = vunpack.c.h.b16 %v233
  %v967 = vunpack.c.l.b16 %v234
  %v968 = vunpack.c.h.b16 %v234
  %v969 = vunpack.c.l.b16 %v235
  %v970 = vunpack.c.h.b16 %v235
  %v971 = vunpack.c.l.b16 %v236
  %v972 = vunpack.c.h.b16 %v236
  %v973 = vunpack.c.l.b16 %v237
  %v974 = vunpack.c.h.b16 %v237
  %v975 = vunpack.c.l.b16 %v238
  %v976 = vunpack.c.h.b16 %v238
  %v977 = vunpack.c.l.b16 %v239
  %v978 = vunpack.c.h.b16 %v239
  %v979 = vunpack.c.l.b16 %v240
  %v980 = vunpack.c.h.b16 %v240
  %v981 = vunpack.c.l.b16 %v241
  %v982 = vunpack.c.h.b16 %v241
  %v983 = vunpack.c.l.b16 %v242
  %v984 = vunpack.c.h.b16 %v242
  %v985 = vunpack.c.l.b16 %v243
  %v986 = vunpack.c.h.b16 %v243
  %v987 = vunpack.c.l.b16 %v244
  %v988 = vunpack.c.h.b16 %v244
  %v989 = vunpack.c.l.b16 %v245
  %v990 = vunpack.c.h.b16 %v245
  %v991 = vunpack.c.l.b16 %v246
  %v992 = vunpack.c.h.b16 %v246
  %v993 = vunpack.c.l.b16 %v247
  %v994 = vunpack.c.h.b16 %v247
  %v995 = vunpack.c.l.b16 %v248
  %v996 = vunpack.c.h.b16 %v248
  %v997 = vunpack.c.l.b16 %v249
  %v998 = vunpack.c.h.b16 %v249
  %v999 = vunpack.c.l.b16 %v250
  %v1000 = vunpack.c.h.b16 %v250
  %v1001 = vunpack.c.l.b16 %v251
  %v1002 = vunpack.c.h.b16 %v251
  %v1003 = vunpack.c.l.b16 %v252
  %v1004 = vunpack.c.h.b16 %v252
  %v1005 = vunpack.c.l.b16 %v253
  %v1006 = vunpack.c.h.b16 %v253
  %v1007 = vunpack.c.l.b16 %v254
  %v1008 = vunpack.c.h.b16 %v254
  %v1009 = vunpack.c.l.b16 %v255
  %v1010 = vunpack.c.h.b16 %v255
  %v1011 = vunpack.c.l.b16 %v256
  %v1012 = vunpack.c.h.b16 %v256
  %v1013 = vunpack.c.l.b16 %v257
  %v1014 = vunpack.c.h.b16 %v257
  %v1015 = vunpack.c.l.b16 %v258
  %v1016 = vunpack.c.h.b16 %v258
  %v1017 = vunpack.c.l.b16 %v259
  %v1018 = vunpack.c.h.b16 %v259
  %v1019 = vunpack.c.l.b16 %v260
  %v1020 = vunpack.c.h.b16 %v260
  %v1021 = vunpack.c.l.b16 %v261
  %v1022 = vunpack.c.h.b16 %v261
  %v1023 = vunpack.c.l.b16 %v262
  %v1024 = vunpack.c.h.b16 %v262
  %v1025 = vunpack.c.l.b16 %v263
  %v1026 = vunpack.c.h.b16 %v263
  %v1027 = vunpack.c.l.b16 %v264
  %v1028 = vunpack.c.h.b16 %v264
  %v1029 = vunpack.c.l.b16 %v265
  %v1030 = vunpack.c.h.b16 %v265
  %v1031 = vunpack.c.l.b16 %v266
  %v1032 = vunpack.c.h.b16 %v266
  %v1033 = vpack.c.b16 %v589, %v585
  %v1034 = vpack.c.b16 %v590, %v586
  %v1035 = vpack.c.b16 %v591, %v587
  %v1036 = vpack.c.b16 %v592, %v588
  %v1037 = vpack.c.b16 %v597, %v593
  %v1038 = vpack.c.b16 %v598, %v594
  %v1039 = vpack.c.b16 %v599, %v595
  %v1040 = vpack.c.b16 %v600, %v596
  %v1041 = vpack.c.b16 %v605, %v601
  %v1042 = vpack.c.b16 %v606, %v602
  %v1043 = vpack.c.b16 %v607, %v603
  %v1044 = vpack.c.b16 %v608, %v604
  %v1045 = vpack.c.b16 %v613, %v609
  %v1046 = vpack.c.b16 %v614, %v610
  %v1047 = vpack.c.b16 %v615, %v611
  %v1048 = vpack.c.b16 %v616, %v612
  %v1049 = vpack.c.b16 %v621, %v617
  %v1050 = vpack.c.b16 %v622, %v618
  %v1051 = vpack.c.b16 %v623, %v619
  %v1052 = vpack.c.b16 %v624, %v620
  %v1053 = vpack.c.b16 %v629, %v625
  %v1054 = vpack.c.b16 %v630, %v626
  %v1055 = vpack.c.b16 %v631, %v627
  %v1056 = vpack.c.b16 %v632, %v628
  %v1057 = vpack.c.b16 %v637, %v633
  %v1058 = vpack.c.b16 %v638, %v634
  %v1059 = vpack.c.b16 %v639, %v635
  %v1060 = vpack.c.b16 %v640, %v636
  %v1061 = vpack.c.b16 %v645, %v641
  %v1062 = vpack.c.b16 %v646, %v642
  %v1063 = vpack.c.b16 %v647, %v643
  %v1064 = vpack.c.b16 %v648, %v644
  %v1065 = vpack.c.b16 %v653, %v649
  %v1066 = vpack.c.b16 %v654, %v650
  %v1067 = vpack.c.b16 %v655, %v651
  %v1068 = vpack.c.b16 %v656, %v652
  %v1069 = vpack.c.b16 %v661, %v657
  %v1070 = vpack.c.b16 %v662, %v658
  %v1071 = vpack.c.b16 %v663, %v659
  %v1072 = vpack.c.b16 %v664, %v660
  %v1073 = vpack.c.b16 %v669, %v665
  %v1074 = vpack.c.b16 %v670, %v666
  %v1075 = vpack.c.b16 %v671, %v667
  %v1076 = vpack.c.b16 %v672, %v668
  %v1077 = vpack.c.b16 %v677, %v673
  %v1078 = vpack.c.b16 %v678, %v674
  %v1079 = vpack.c.b16 %v679, %v675
  %v1080 = vpack.c.b16 %v680, %v676
  %v1081 = vpack.c.b16 %v685, %v681
  %v1082 = vpack.c.b16 %v686, %v682
  %v1083 = vpack.c.b16 %v687, %v683
  %v1084 = vpack.c.b16 %v688, %v684
  %v1085 = vpack.c.b16 %v693, %v689
  %v1086 = vpack.c.b16 %v694, %v690
  %v1087 = vpack.c.b16 %v695, %v691
  %v1088 = vpack.c.b16 %v696, %v692
  %v1089 = vpack.c.b16 %v701, %v697
  %v1090 = vpack.c.b16 %v702, %v698
  %v1091 = vpack.c.b16 %v703, %v699
  %v1092 = vpack.c.b16 %v704, %v700
  %v1093 = vpack.c.b16 %v709, %v705
  %v1094 = vpack.c.b16 %v710, %v706
  %v1095 = vpack.c.b16 %v711, %v707
  %v1096 = vpack.c.b16 %v712, %v708
  %v1097 = vpack.c.b16 %v717, %v713
  %v1098 = vpack.c.b16 %v718, %v714
  %v1099 = vpack.c.b16 %v719, %v715
  %v1100 = vpack.c.b16 %v720, %v716
  %v1101 = vpack.c.b16 %v725, %v721
  %v1102 = vpack.c.b16 %v726, %v722
  %v1103 = vpack.c.b16 %v727, %v723
  %v1104 = vpack.c.b16 %v728, %v724
  %v1105 = vpack.c.b16 %v733, %v729
  %v1106 = vpack.c.b16 %v734, %v730
  %v1107 = vpack.c.b16 %v735, %v731
  %v1108 = vpack.c.b16 %v736, %v732
  %v1109 = vpack.c.b16 %v741, %v737
  %v1110 = vpack.c.b16 %v742, %v738
  %v1111 = vpack.c.b16 %v743, %v739
  %v1112 = vpack.c.b16 %v744, %v740
  %v1113 = vpack.c.b16 %v749, %v745
  %v1114 = vpack.c.b16 %v750, %v746
  %v1115 = vpack.c.b16 %v751, %v747
  %v1116 = vpack.c.b16 %v752, %v748
  %v1117 = vpack.c.b16 %v757, %v753
  %v1118 = vpack.c.b16 %v758, %v754
  %v1119 = vpack.c.b16 %v759, %v755
  %v1120 = vpack.c.b16 %v760, %v756
  %v1121 = vpack.c.b16 %v765, %v761
  %v1122 = vpack.c.b16 %v766, %v762
  %v1123 = vpack.c.b16 %v767, %v763
  %v1124 = vpack.c.b16 %v768, %v764
  %v1125 = vpack.c.b16 %v773, %v769
  %v1126 = vpack.c.b16 %v774, %v770
  %v1127 = vpack.c.b16 %v775, %v771
  %v1128 = vpack.c.b16 %v776, %v772
  %v1129 = vpack.c.b16 %v781, %v777
  %v1130 = vpack.c.b16 %v782, %v778
  %v1131 = vpack.c.b16 %v783, %v779
  %v1132 = vpack.c.b16 %v784, %v780
  %v1133 = vpack.c.b16 %v789, %v785
  %v1134 = vpack.c.b16 %v790, %v786
  %v1135 = vpack.c.b16 %v791, %v787
  %v1136 = vpack.c.b16 %v792, %v788
  %v1137 = vpack.c.b16 %v797, %v793
  %v1138 = vpack.c.b16 %v798, %v794
  %v1139 = vpack.c.b16 %v799, %v795
  %v1140 = vpack.c.b16 %v800, %v796
  %v1141 = vpack.c.b16 %v805, %v801
  %v1142 = vpack.c.b16 %v806, %v802
  %v1143 = vpack.c.b16 %v807, %v803
  %v1144 = vpack.c.b16 %v808, %v804
  %v1145 = vpack.c.b16 %v813, %v809
  %v1146 = vpack.c.b16 %v814, %v810
  %v1147 = vpack.c.b16 %v815, %v811
  %v1148 = vpack.c.b16 %v816, %v812
  %v1149 = vpack.c.b16 %v821, %v817
  %v1150 = vpack.c.b16 %v822, %v818
  %v1151 = vpack.c.b16 %v823, %v819
  %v1152 = vpack.c.b16 %v824, %v820
  %v1153 = vpack.c.b16 %v829, %v825
  %v1154 = vpack.c.b16 %v830, %v826
  %v1155 = vpack.c.b16 %v831, %v827
  %v1156 = vpack.c.b16 %v832, %v828
  %v1157 = vpack.c.b16 %v837, %v833
  %v1158 = vpack.c.b16 %v838, %v834
  %v1159 = vpack.c.b16 %v839, %v835
  %v1160 = vpack.c.b16 %v840, %v836
  %v1161 = vpack.c.b16 %v845, %v841
  %v1162 = vpack.c.b16 %v846, %v842
  %v1163 = vpack.c.b16 %v847, %v843
  %v1164 = vpack.c.b16 %v848, %v844
  %v1165 = vpack.c.b16 %v853, %v849
  %v1166 = vpack.c.b16 %v854, %v850
  %v1167 = vpack.c.b16 %v855, %v851
  %v1168 = vpack.c.b16 %v856, %v852
  %v1169 = vpack.c.b16 %v861, %v857
  %v1170 = vpack.c.b16 %v862, %v858
  %v1171 = vpack.c.b16 %v863, %v859
  %v1172 = vpack.c.b16 %v864, %v860
  %v1173 = vpack.c.b16 %v869, %v865
  %v1174 = vpack.c.b16 %v870, %v866
  %v1175 = vpack.c.b16 %v871, %v867
  %v1176 = vpack.c.b16 %v872, %v868
  %v1177 = vpack.c.b16 %v877, %v873
  %v1178 = vpack.c.b16 %v878, %v874
  %v1179 = vpack.c.b16 %v879, %v875
  %v1180 = vpack.c.b16 %v880, %v876
  %v1181 = vpack.c.b16 %v885, %v881
  %v1182 = vpack.c.b16 %v886, %v882
  %v1183 = vpack.c.b16 %v887, %v883
  %v1184 = vpack.c.b16 %v888, %v884
  %v1185 = vpack.c.b16 %v893, %v889
  %v1186 = vpack.c.b16 %v894, %v890
  %v1187 = vpack.c.b16 %v895, %v891
  %v1188 = vpack.c.b16 %v896, %v892
  %v1189 = vpack.c.b16 %v901, %v897
  %v1190 = vpack.c.b16 %v902, %v898
  %v1191 = vpack.c.b16 %v903, %v899
  %v1192 = vpack.c.b16 %v904, %v900
  %v1193 = vpack.c.b16 %v909, %v905
  %v1194 = vpack.c.b16 %v910, %v906
  %v1195 = vpack.c.b16 %v911, %v907
  %v1196 = vpack.c.b16 %v912, %v908
  %v1197 = vpack.c.b16 %v917, %v913
  %v1198 = vpack.c.b16 %v918, %v914
  %v1199 = vpack.c.b16 %v919, %v915
  %v1200 = vpack.c.b16 %v920, %v916
  %v1201 = vpack.c.b16 %v925, %v921
  %v1202 = vpack.c.b16 %v926, %v922
  %v1203 = vpack.c.b16 %v927, %v923
  %v1204 = vpack.c.b16 %v928, %v924
  %v1205 = vpack.c.b16 %v933, %v929
  %v1206 = vpack.c.b16 %v934, %v930
  %v1207 = vpack.c.b16 %v935, %v931
  %v1208 = vpack.c.b16 %v936, %v932
  %v1209 = vpack.c.b16 %v941, %v937
  %v1210 = vpack.c.b16 %v942, %v938
  %v1211 = vpack.c.b16 %v943, %v939
  %v1212 = vpack.c.b16 %v944, %v940
  %v1213 = vpack.c.b16 %v949, %v945
  %v1214 = vpack.c.b16 %v950, %v946
  %v1215 = vpack.c.b16 %v951, %v947
  %v1216 = vpack.c.b16 %v952, %v948
  %v1217 = vpack.c.b16 %v957, %v953
  %v1218 = vpack.c.b16 %v958, %v954
  %v1219 = vpack.c.b16 %v959, %v955
  %v1220 = vpack.c.b16 %v960, %v956
  %v1221 = vpack.c.b16 %v965, %v961
  %v1222 = vpack.c.b16 %v966, %v962
  %v1223 = vpack.c.b16 %v967, %v963
  %v1224 = vpack.c.b16 %v968, %v964
  %v1225 = vpack.c.b16 %v973, %v969
  %v1226 = vpack.c.b16 %v974, %v970
  %v1227 = vpack.c.b16 %v975, %v971
  %v1228 = vpack.c.b16 %v976, %v972
  %v1229 = vpack.c.b16 %v981, %v977
  %v1230 = vpack.c.b16 %v982, %v978
  %v1231 = vpack.c.b16 %v983, %v979
  %v1232 = vpack.c.b16 %v984, %v980
  %v1233 = vpack.c.b16 %v989, %v985
  %v1234 = vpack.c.b16 %v990, %v986
  %v1235 = vpack.c.b16 %v991, %v987
  %v1236 = vpack.c.b16 %v992, %v988
  %v1237 = vpack.c.b16 %v997, %v993
  %v1238 = vpack.c.b16 %v998, %v994
  %v1239 = vpack.c.b16 %v999, %v995
  %v1240 = vpack.c.b16 %v1000, %v996
  %v1241 = vpack.c.b16 %v1005, %v1001
  %v1242 = vpack.c.b16 %v1006, %v1002
  %v1243 = vpack.c.b16 %v1007, %v1003
  %v1244 = vpack.c.b16 %v1008, %v1004
  %v1245 = vpack.c.b16 %v1013, %v1009
  %v1246 = vpack.c.b16 %v1014, %v1010
  %v1247 = vpack.c.b16 %v1015, %v1011
  %v1248 = vpack.c.b16 %v1016, %v1012
  %v1249 = vpack.c.b16 %v1021, %v1017
  %v1250 = vpack.c.b16 %v1022, %v1018
  %v1251 = vpack.c.b16 %v1023, %v1019
  %v1252 = vpack.c.b16 %v1024, %v1020
  %v1253 = vpack.c.b16 %v1029, %v1025
  %v1254 = vpack.c.b16 %v1030, %v1026
  %v1255 = vpack.c.b16 %v1031, %v1027
  %v1256 = vpack.c.b16 %v1032, %v1028
  %1481 = vmatprep.subr.bf16.mxu0 %v1034
  %1482 = vmatpush1.bf16.msra.mxu0 %v1033
  %1483 = vmatprep.subr.bf16.mxu0 %v1038
  %1484 = vmatpush1.bf16.msra.mxu0 %v1037
  %1485 = vmatprep.subr.bf16.mxu0 %v1042
  %1486 = vmatpush1.bf16.msra.mxu0 %v1041
  %1487 = vmatprep.subr.bf16.mxu0 %v1046
  %1488 = vmatpush1.bf16.msra.mxu0 %v1045
  %1489 = vmatprep.subr.bf16.mxu0 %v1050
  %1490 = vmatpush1.bf16.msra.mxu0 %v1049
  %1491 = vmatprep.subr.bf16.mxu0 %v1054
  %1492 = vmatpush1.bf16.msra.mxu0 %v1053
  %1493 = vmatprep.subr.bf16.mxu0 %v1058
  %1494 = vmatpush1.bf16.msra.mxu0 %v1057
  %1495 = vmatprep.subr.bf16.mxu0 %v1062
  %1496 = vmatpush1.bf16.msra.mxu0 %v1061
  %1497 = vmatprep.subr.bf16.mxu0 %v1066
  %1498 = vmatpush1.bf16.msra.mxu0 %v1065
  %1499 = vmatprep.subr.bf16.mxu0 %v1070
  %1500 = vmatpush1.bf16.msra.mxu0 %v1069
  %1501 = vmatprep.subr.bf16.mxu0 %v1074
  %1502 = vmatpush1.bf16.msra.mxu0 %v1073
  %1503 = vmatprep.subr.bf16.mxu0 %v1078
  %1504 = vmatpush1.bf16.msra.mxu0 %v1077
  %1505 = vmatprep.subr.bf16.mxu0 %v1082
  %1506 = vmatpush1.bf16.msra.mxu0 %v1081
  %1507 = vmatprep.subr.bf16.mxu0 %v1086
  %1508 = vmatpush1.bf16.msra.mxu0 %v1085
  %1509 = vmatprep.subr.bf16.mxu0 %v1090
  %1510 = vmatpush1.bf16.msra.mxu0 %v1089
  %1511 = vmatprep.subr.bf16.mxu0 %v1094
  %1512 = vmatpush1.bf16.msra.mxu0 %v1093
  %1513 = vmatprep.mubr.bf16.mxu0 %v334
  %1514 = vmatmul.mubr.bf16.gmra.mrb[0].mxu0 %v333
  %v1515 = vpop.f32.mrb[0].mxu0
  %v1516 = vadd.f32 %v272, %v1515
  %v1517 = vpop.f32.mrb[0].mxu0
  %v1518 = vadd.f32 %v276, %v1517
  %v1519 = vpop.f32.mrb[0].mxu0
  %v1520 = vadd.f32 %v272, %v1519
  %v1521 = vpop.f32.mrb[0].mxu0
  %v1522 = vadd.f32 %v276, %v1521
  %1523 = vmatprep.mubr.bf16.mxu0 %v341
  %1524 = vmatmul.mubr.bf16.gmra.mrb[0].mxu0 %v340
  %v1525 = vpop.f32.mrb[0].mxu0
  %v1526 = vadd.f32 %v272, %v1525
  %v1527 = vpop.f32.mrb[0].mxu0
  %v1528 = vadd.f32 %v276, %v1527
  %v1529 = vpop.f32.mrb[0].mxu0
  %v1530 = vadd.f32 %v272, %v1529
  %v1531 = vpop.f32.mrb[0].mxu0
  %v1532 = vadd.f32 %v276, %v1531
  %1533 = vdwg.mxu0
  %1534 = vmatprep.subr.bf16.mxu0 %v1098
  %1535 = vmatpush1.bf16.msra.mxu0 %v1097
  %1536 = vmatprep.subr.bf16.mxu0 %v1102
  %1537 = vmatpush1.bf16.msra.mxu0 %v1101
  %1538 = vmatprep.subr.bf16.mxu0 %v1106
  %1539 = vmatpush1.bf16.msra.mxu0 %v1105
  %1540 = vmatprep.subr.bf16.mxu0 %v1110
  %1541 = vmatpush1.bf16.msra.mxu0 %v1109
  %1542 = vmatprep.subr.bf16.mxu0 %v1114
  %1543 = vmatpush1.bf16.msra.mxu0 %v1113
  %1544 = vmatprep.subr.bf16.mxu0 %v1118
  %1545 = vmatpush1.bf16.msra.mxu0 %v1117
  %1546 = vmatprep.subr.bf16.mxu0 %v1122
  %1547 = vmatpush1.bf16.msra.mxu0 %v1121
  %1548 = vmatprep.subr.bf16.mxu0 %v1126
  %1549 = vmatpush1.bf16.msra.mxu0 %v1125
  %1550 = vmatprep.subr.bf16.mxu0 %v1130
  %1551 = vmatpush1.bf16.msra.mxu0 %v1129
  %1552 = vmatprep.subr.bf16.mxu0 %v1134
  %1553 = vmatpush1.bf16.msra.mxu0 %v1133
  %1554 = vmatprep.subr.bf16.mxu0 %v1138
  %1555 = vmatpush1.bf16.msra.mxu0 %v1137
  %1556 = vmatprep.subr.bf16.mxu0 %v1142
  %1557 = vmatpush1.bf16.msra.mxu0 %v1141
  %1558 = vmatprep.subr.bf16.mxu0 %v1146
  %1559 = vmatpush1.bf16.msra.mxu0 %v1145
  %1560 = vmatprep.subr.bf16.mxu0 %v1150
  %1561 = vmatpush1.bf16.msra.mxu0 %v1149
  %1562 = vmatprep.subr.bf16.mxu0 %v1154
  %1563 = vmatpush1.bf16.msra.mxu0 %v1153
  %1564 = vmatprep.subr.bf16.mxu0 %v1158
  %1565 = vmatpush1.bf16.msra.mxu0 %v1157
  %1566 = vmatprep.mubr.bf16.mxu0 %v336
  %1567 = vmatmul.mubr.bf16.gmra.mrb[0].mxu0 %v335
  %v1568 = vpop.f32.mrb[0].mxu0
  %v1569 = vadd.f32 %v1516, %v1568
  %v1570 = vpop.f32.mrb[0].mxu0
  %v1571 = vadd.f32 %v1518, %v1570
  %v1572 = vpop.f32.mrb[0].mxu0
  %v1573 = vadd.f32 %v1520, %v1572
  %v1574 = vpop.f32.mrb[0].mxu0
  %v1575 = vadd.f32 %v1522, %v1574
  %1576 = vmatprep.mubr.bf16.mxu0 %v343
  %1577 = vmatmul.mubr.bf16.gmra.mrb[0].mxu0 %v342
  %v1578 = vpop.f32.mrb[0].mxu0
  %v1579 = vadd.f32 %v1526, %v1578
  %v1580 = vpop.f32.mrb[0].mxu0
  %v1581 = vadd.f32 %v1528, %v1580
  %v1582 = vpop.f32.mrb[0].mxu0
  %v1583 = vadd.f32 %v1530, %v1582
  %v1584 = vpop.f32.mrb[0].mxu0
  %v1585 = vadd.f32 %v1532, %v1584
  %1586 = vdwg.mxu0
  %1587 = vmatprep.subr.bf16.mxu0 %v1162
  %1588 = vmatpush1.bf16.msra.mxu0 %v1161
  %1589 = vmatprep.subr.bf16.mxu0 %v1166
  %1590 = vmatpush1.bf16.msra.mxu0 %v1165
  %1591 = vmatprep.subr.bf16.mxu0 %v1170
  %1592 = vmatpush1.bf16.msra.mxu0 %v1169
  %1593 = vmatprep.subr.bf16.mxu0 %v1174
  %1594 = vmatpush1.bf16.msra.mxu0 %v1173
  %1595 = vmatprep.subr.bf16.mxu0 %v1178
  %1596 = vmatpush1.bf16.msra.mxu0 %v1177
  %1597 = vmatprep.subr.bf16.mxu0 %v1182
  %1598 = vmatpush1.bf16.msra.mxu0 %v1181
  %1599 = vmatprep.subr.bf16.mxu0 %v1186
  %1600 = vmatpush1.bf16.msra.mxu0 %v1185
  %1601 = vmatprep.subr.bf16.mxu0 %v1190
  %1602 = vmatpush1.bf16.msra.mxu0 %v1189
  %1603 = vmatprep.subr.bf16.mxu0 %v1194
  %1604 = vmatpush1.bf16.msra.mxu0 %v1193
  %1605 = vmatprep.subr.bf16.mxu0 %v1198
  %1606 = vmatpush1.bf16.msra.mxu0 %v1197
  %1607 = vmatprep.subr.bf16.mxu0 %v1202
  %1608 = vmatpush1.bf16.msra.mxu0 %v1201
  %1609 = vmatprep.subr.bf16.mxu0 %v1206
  %1610 = vmatpush1.bf16.msra.mxu0 %v1205
  %1611 = vmatprep.subr.bf16.mxu0 %v1210
  %1612 = vmatpush1.bf16.msra.mxu0 %v1209
  %1613 = vmatprep.subr.bf16.mxu0 %v1214
  %1614 = vmatpush1.bf16.msra.mxu0 %v1213
  %1615 = vmatprep.subr.bf16.mxu0 %v1218
  %1616 = vmatpush1.bf16.msra.mxu0 %v1217
  %1617 = vmatprep.subr.bf16.mxu0 %v1222
  %1618 = vmatpush1.bf16.msra.mxu0 %v1221
  %1619 = vmatprep.mubr.bf16.mxu0 %v338
  %1620 = vmatmul.mubr.bf16.gmra.mrb[0].mxu0 %v337
  %v1621 = vpop.f32.mrb[0].mxu0
  %v1622 = vadd.f32 %v1569, %v1621
  %v1623 = vpop.f32.mrb[0].mxu0
  %v1624 = vadd.f32 %v1571, %v1623
  %v1625 = vpop.f32.mrb[0].mxu0
  %v1626 = vadd.f32 %v1573, %v1625
  %v1627 = vpop.f32.mrb[0].mxu0
  %v1628 = vadd.f32 %v1575, %v1627
  %1629 = vmatprep.mubr.bf16.mxu0 %v345
  %1630 = vmatmul.mubr.bf16.gmra.mrb[0].mxu0 %v344
  %v1631 = vpop.f32.mrb[0].mxu0
  %v1632 = vadd.f32 %v1579, %v1631
  %v1633 = vpop.f32.mrb[0].mxu0
  %v1634 = vadd.f32 %v1581, %v1633
  %v1635 = vpop.f32.mrb[0].mxu0
  %v1636 = vadd.f32 %v1583, %v1635
  %v1637 = vpop.f32.mrb[0].mxu0
  %v1638 = vadd.f32 %v1585, %v1637
  %1639 = vdwg.mxu0
  %1640 = vmatprep.subr.bf16.mxu0 %v1226
  %1641 = vmatpush1.bf16.msra.mxu0 %v1225
  %1642 = vmatprep.subr.bf16.mxu0 %v1230
  %1643 = vmatpush1.bf16.msra.mxu0 %v1229
  %1644 = vmatprep.subr.bf16.mxu0 %v1234
  %1645 = vmatpush1.bf16.msra.mxu0 %v1233
  %1646 = vmatprep.subr.bf16.mxu0 %v1238
  %1647 = vmatpush1.bf16.msra.mxu0 %v1237
  %1648 = vmatprep.subr.bf16.mxu0 %v1242
  %1649 = vmatpush1.bf16.msra.mxu0 %v1241
  %1650 = vmatprep.subr.bf16.mxu0 %v1246
  %1651 = vmatpush1.bf16.msra.mxu0 %v1245
  %1652 = vmatprep.subr.bf16.mxu0 %v1250
  %1653 = vmatpush1.bf16.msra.mxu0 %v1249
  %1654 = vmatprep.subr.bf16.mxu0 %v1254
  %1655 = vmatpush1.bf16.msra.mxu0 %v1253
  %1656 = vmatprep.subr.bf16.mxu0 0
  %1657 = vmatpush1.bf16.msra.mxu0 0
  %1658 = vmatprep.subr.bf16.mxu0 0
  %1659 = vmatpush1.bf16.msra.mxu0 0
  %1660 = vmatprep.subr.bf16.mxu0 0
  %1661 = vmatpush1.bf16.msra.mxu0 0
  %1662 = vmatprep.subr.bf16.mxu0 0
  %1663 = vmatpush1.bf16.msra.mxu0 0
  %1664 = vmatprep.subr.bf16.mxu0 0
  %1665 = vmatpush1.bf16.msra.mxu0 0
  %1666 = vmatprep.subr.bf16.mxu0 0
  %1667 = vmatpush1.bf16.msra.mxu0 0
  %1668 = vmatprep.subr.bf16.mxu0 0
  %1669 = vmatpush1.bf16.msra.mxu0 0
  %1670 = vmatprep.subr.bf16.mxu0 0
  %1671 = vmatpush1.bf16.msra.mxu0 0
  %1672 = vmatprep.mubr.bf16.mxu0 0
  %1673 = vmatmul.mubr.bf16.gmra.mrb[0].mxu0 %v339
  %v1674 = vpop.f32.mrb[0].mxu0
  %v1675 = vadd.f32 %v1622, %v1674
  %v1676 = vpop.f32.mrb[0].mxu0
  %v1677 = vadd.f32 %v1624, %v1676
  %v1678 = vpop.f32.mrb[0].mxu0
  %v1679 = vadd.f32 %v1626, %v1678
  %v1680 = vpop.f32.mrb[0].mxu0
  %v1681 = vadd.f32 %v1628, %v1680
  %1682 = vmatprep.mubr.bf16.mxu0 0
  %1683 = vmatmul.mubr.bf16.gmra.mrb[0].mxu0 %v346
  %v1684 = vpop.f32.mrb[0].mxu0
  %v1685 = vadd.f32 %v1632, %v1684
  %v1686 = vpop.f32.mrb[0].mxu0
  %v1687 = vadd.f32 %v1634, %v1686
  %v1688 = vpop.f32.mrb[0].mxu0
  %v1689 = vadd.f32 %v1636, %v1688
  %v1690 = vpop.f32.mrb[0].mxu0
  %v1691 = vadd.f32 %v1638, %v1690
  %1692 = vdwg.mxu0
  %1693 = vmatprep.subr.bf16.mxu0 %v1036
  %1694 = vmatpush1.bf16.msra.mxu0 %v1035
  %1695 = vmatprep.subr.bf16.mxu0 %v1040
  %1696 = vmatpush1.bf16.msra.mxu0 %v1039
  %1697 = vmatprep.subr.bf16.mxu0 %v1044
  %1698 = vmatpush1.bf16.msra.mxu0 %v1043
  %1699 = vmatprep.subr.bf16.mxu0 %v1048
  %1700 = vmatpush1.bf16.msra.mxu0 %v1047
  %1701 = vmatprep.subr.bf16.mxu0 %v1052
  %1702 = vmatpush1.bf16.msra.mxu0 %v1051
  %1703 = vmatprep.subr.bf16.mxu0 %v1056
  %1704 = vmatpush1.bf16.msra.mxu0 %v1055
  %1705 = vmatprep.subr.bf16.mxu0 %v1060
  %1706 = vmatpush1.bf16.msra.mxu0 %v1059
  %1707 = vmatprep.subr.bf16.mxu0 %v1064
  %1708 = vmatpush1.bf16.msra.mxu0 %v1063
  %1709 = vmatprep.subr.bf16.mxu0 %v1068
  %1710 = vmatpush1.bf16.msra.mxu0 %v1067
  %1711 = vmatprep.subr.bf16.mxu0 %v1072
  %1712 = vmatpush1.bf16.msra.mxu0 %v1071
  %1713 = vmatprep.subr.bf16.mxu0 %v1076
  %1714 = vmatpush1.bf16.msra.mxu0 %v1075
  %1715 = vmatprep.subr.bf16.mxu0 %v1080
  %1716 = vmatpush1.bf16.msra.mxu0 %v1079
  %1717 = vmatprep.subr.bf16.mxu0 %v1084
  %1718 = vmatpush1.bf16.msra.mxu0 %v1083
  %1719 = vmatprep.subr.bf16.mxu0 %v1088
  %1720 = vmatpush1.bf16.msra.mxu0 %v1087
  %1721 = vmatprep.subr.bf16.mxu0 %v1092
  %1722 = vmatpush1.bf16.msra.mxu0 %v1091
  %1723 = vmatprep.subr.bf16.mxu0 %v1096
  %1724 = vmatpush1.bf16.msra.mxu0 %v1095
  %1725 = vmatprep.mubr.bf16.mxu0 %v334
  %1726 = vmatmul.mubr.bf16.gmra.mrb[0].mxu0 %v333
  %v1727 = vpop.f32.mrb[0].mxu0
  %v1728 = vadd.f32 %v280, %v1727
  %v1729 = vpop.f32.mrb[0].mxu0
  %v1730 = vadd.f32 %v284, %v1729
  %v1731 = vpop.f32.mrb[0].mxu0
  %v1732 = vadd.f32 %v280, %v1731
  %v1733 = vpop.f32.mrb[0].mxu0
  %v1734 = vadd.f32 %v284, %v1733
  %1735 = vmatprep.mubr.bf16.mxu0 %v341
  %1736 = vmatmul.mubr.bf16.gmra.mrb[0].mxu0 %v340
  %v1737 = vpop.f32.mrb[0].mxu0
  %v1738 = vadd.f32 %v280, %v1737
  %v1739 = vpop.f32.mrb[0].mxu0
  %v1740 = vadd.f32 %v284, %v1739
  %v1741 = vpop.f32.mrb[0].mxu0
  %v1742 = vadd.f32 %v280, %v1741
  %v1743 = vpop.f32.mrb[0].mxu0
  %v1744 = vadd.f32 %v284, %v1743
  %1745 = vdwg.mxu0
  %1746 = vmatprep.subr.bf16.mxu0 %v1100
  %1747 = vmatpush1.bf16.msra.mxu0 %v1099
  %1748 = vmatprep.subr.bf16.mxu0 %v1104
  %1749 = vmatpush1.bf16.msra.mxu0 %v1103
  %1750 = vmatprep.subr.bf16.mxu0 %v1108
  %1751 = vmatpush1.bf16.msra.mxu0 %v1107
  %1752 = vmatprep.subr.bf16.mxu0 %v1112
  %1753 = vmatpush1.bf16.msra.mxu0 %v1111
  %1754 = vmatprep.subr.bf16.mxu0 %v1116
  %1755 = vmatpush1.bf16.msra.mxu0 %v1115
  %1756 = vmatprep.subr.bf16.mxu0 %v1120
  %1757 = vmatpush1.bf16.msra.mxu0 %v1119
  %1758 = vmatprep.subr.bf16.mxu0 %v1124
  %1759 = vmatpush1.bf16.msra.mxu0 %v1123
  %1760 = vmatprep.subr.bf16.mxu0 %v1128
  %1761 = vmatpush1.bf16.msra.mxu0 %v1127
  %1762 = vmatprep.subr.bf16.mxu0 %v1132
  %1763 = vmatpush1.bf16.msra.mxu0 %v1131
  %1764 = vmatprep.subr.bf16.mxu0 %v1136
  %1765 = vmatpush1.bf16.msra.mxu0 %v1135
  %1766 = vmatprep.subr.bf16.mxu0 %v1140
  %1767 = vmatpush1.bf16.msra.mxu0 %v1139
  %1768 = vmatprep.subr.bf16.mxu0 %v1144
  %1769 = vmatpush1.bf16.msra.mxu0 %v1143
  %1770 = vmatprep.subr.bf16.mxu0 %v1148
  %1771 = vmatpush1.bf16.msra.mxu0 %v1147
  %1772 = vmatprep.subr.bf16.mxu0 %v1152
  %1773 = vmatpush1.bf16.msra.mxu0 %v1151
  %1774 = vmatprep.subr.bf16.mxu0 %v1156
  %1775 = vmatpush1.bf16.msra.mxu0 %v1155
  %1776 = vmatprep.subr.bf16.mxu0 %v1160
  %1777 = vmatpush1.bf16.msra.mxu0 %v1159
  %1778 = vmatprep.mubr.bf16.mxu0 %v336
  %1779 = vmatmul.mubr.bf16.gmra.mrb[0].mxu0 %v335
  %v1780 = vpop.f32.mrb[0].mxu0
  %v1781 = vadd.f32 %v1728, %v1780
  %v1782 = vpop.f32.mrb[0].mxu0
  %v1783 = vadd.f32 %v1730, %v1782
  %v1784 = vpop.f32.mrb[0].mxu0
  %v1785 = vadd.f32 %v1732, %v1784
  %v1786 = vpop.f32.mrb[0].mxu0
  %v1787 = vadd.f32 %v1734, %v1786
  %1788 = vmatprep.mubr.bf16.mxu0 %v343
  %1789 = vmatmul.mubr.bf16.gmra.mrb[0].mxu0 %v342
  %v1790 = vpop.f32.mrb[0].mxu0
  %v1791 = vadd.f32 %v1738, %v1790
  %v1792 = vpop.f32.mrb[0].mxu0
  %v1793 = vadd.f32 %v1740, %v1792
  %v1794 = vpop.f32.mrb[0].mxu0
  %v1795 = vadd.f32 %v1742, %v1794
  %v1796 = vpop.f32.mrb[0].mxu0
  %v1797 = vadd.f32 %v1744, %v1796
  %1798 = vdwg.mxu0
  %1799 = vmatprep.subr.bf16.mxu0 %v1164
  %1800 = vmatpush1.bf16.msra.mxu0 %v1163
  %1801 = vmatprep.subr.bf16.mxu0 %v1168
  %1802 = vmatpush1.bf16.msra.mxu0 %v1167
  %1803 = vmatprep.subr.bf16.mxu0 %v1172
  %1804 = vmatpush1.bf16.msra.mxu0 %v1171
  %1805 = vmatprep.subr.bf16.mxu0 %v1176
  %1806 = vmatpush1.bf16.msra.mxu0 %v1175
  %1807 = vmatprep.subr.bf16.mxu0 %v1180
  %1808 = vmatpush1.bf16.msra.mxu0 %v1179
  %1809 = vmatprep.subr.bf16.mxu0 %v1184
  %1810 = vmatpush1.bf16.msra.mxu0 %v1183
  %1811 = vmatprep.subr.bf16.mxu0 %v1188
  %1812 = vmatpush1.bf16.msra.mxu0 %v1187
  %1813 = vmatprep.subr.bf16.mxu0 %v1192
  %1814 = vmatpush1.bf16.msra.mxu0 %v1191
  %1815 = vmatprep.subr.bf16.mxu0 %v1196
  %1816 = vmatpush1.bf16.msra.mxu0 %v1195
  %1817 = vmatprep.subr.bf16.mxu0 %v1200
  %1818 = vmatpush1.bf16.msra.mxu0 %v1199
  %1819 = vmatprep.subr.bf16.mxu0 %v1204
  %1820 = vmatpush1.bf16.msra.mxu0 %v1203
  %1821 = vmatprep.subr.bf16.mxu0 %v1208
  %1822 = vmatpush1.bf16.msra.mxu0 %v1207
  %1823 = vmatprep.subr.bf16.mxu0 %v1212
  %1824 = vmatpush1.bf16.msra.mxu0 %v1211
  %1825 = vmatprep.subr.bf16.mxu0 %v1216
  %1826 = vmatpush1.bf16.msra.mxu0 %v1215
  %1827 = vmatprep.subr.bf16.mxu0 %v1220
  %1828 = vmatpush1.bf16.msra.mxu0 %v1219
  %1829 = vmatprep.subr.bf16.mxu0 %v1224
  %1830 = vmatpush1.bf16.msra.mxu0 %v1223
  %1831 = vmatprep.mubr.bf16.mxu0 %v338
  %1832 = vmatmul.mubr.bf16.gmra.mrb[0].mxu0 %v337
  %v1833 = vpop.f32.mrb[0].mxu0
  %v1834 = vadd.f32 %v1781, %v1833
  %v1835 = vpop.f32.mrb[0].mxu0
  %v1836 = vadd.f32 %v1783, %v1835
  %v1837 = vpop.f32.mrb[0].mxu0
  %v1838 = vadd.f32 %v1785, %v1837
  %v1839 = vpop.f32.mrb[0].mxu0
  %v1840 = vadd.f32 %v1787, %v1839
  %1841 = vmatprep.mubr.bf16.mxu0 %v345
  %1842 = vmatmul.mubr.bf16.gmra.mrb[0].mxu0 %v344
  %v1843 = vpop.f32.mrb[0].mxu0
  %v1844 = vadd.f32 %v1791, %v1843
  %v1845 = vpop.f32.mrb[0].mxu0
  %v1846 = vadd.f32 %v1793, %v1845
  %v1847 = vpop.f32.mrb[0].mxu0
  %v1848 = vadd.f32 %v1795, %v1847
  %v1849 = vpop.f32.mrb[0].mxu0
  %v1850 = vadd.f32 %v1797, %v1849
  %1851 = vdwg.mxu0
  %1852 = vmatprep.subr.bf16.mxu0 %v1228
  %1853 = vmatpush1.bf16.msra.mxu0 %v1227
  %1854 = vmatprep.subr.bf16.mxu0 %v1232
  %1855 = vmatpush1.bf16.msra.mxu0 %v1231
  %1856 = vmatprep.subr.bf16.mxu0 %v1236
  %1857 = vmatpush1.bf16.msra.mxu0 %v1235
  %1858 = vmatprep.subr.bf16.mxu0 %v1240
  %1859 = vmatpush1.bf16.msra.mxu0 %v1239
  %1860 = vmatprep.subr.bf16.mxu0 %v1244
  %1861 = vmatpush1.bf16.msra.mxu0 %v1243
  %1862 = vmatprep.subr.bf16.mxu0 %v1248
  %1863 = vmatpush1.bf16.msra.mxu0 %v1247
  %1864 = vmatprep.subr.bf16.mxu0 %v1252
  %1865 = vmatpush1.bf16.msra.mxu0 %v1251
  %1866 = vmatprep.subr.bf16.mxu0 %v1256
  %1867 = vmatpush1.bf16.msra.mxu0 %v1255
  %1868 = vmatprep.subr.bf16.mxu0 0
  %1869 = vmatpush1.bf16.msra.mxu0 0
  %1870 = vmatprep.subr.bf16.mxu0 0
  %1871 = vmatpush1.bf16.msra.mxu0 0
  %1872 = vmatprep.subr.bf16.mxu0 0
  %1873 = vmatpush1.bf16.msra.mxu0 0
  %1874 = vmatprep.subr.bf16.mxu0 0
  %1875 = vmatpush1.bf16.msra.mxu0 0
  %1876 = vmatprep.subr.bf16.mxu0 0
  %1877 = vmatpush1.bf16.msra.mxu0 0
  %1878 = vmatprep.subr.bf16.mxu0 0
  %1879 = vmatpush1.bf16.msra.mxu0 0
  %1880 = vmatprep.subr.bf16.mxu0 0
  %1881 = vmatpush1.bf16.msra.mxu0 0
  %1882 = vmatprep.subr.bf16.mxu0 0
  %1883 = vmatpush1.bf16.msra.mxu0 0
  %1884 = vmatprep.mubr.bf16.mxu0 0
  %1885 = vmatmul.mubr.bf16.gmra.mrb[0].mxu0 %v339
  %v1886 = vpop.f32.mrb[0].mxu0
  %v1887 = vadd.f32 %v1834, %v1886
  %v1888 = vpop.f32.mrb[0].mxu0
  %v1889 = vadd.f32 %v1836, %v1888
  %v1890 = vpop.f32.mrb[0].mxu0
  %v1891 = vadd.f32 %v1838, %v1890
  %v1892 = vpop.f32.mrb[0].mxu0
  %v1893 = vadd.f32 %v1840, %v1892
  %1894 = vmatprep.mubr.bf16.mxu0 0
  %1895 = vmatmul.mubr.bf16.gmra.mrb[0].mxu0 %v346
  %v1896 = vpop.f32.mrb[0].mxu0
  %v1897 = vadd.f32 %v1844, %v1896
  %v1898 = vpop.f32.mrb[0].mxu0
  %v1899 = vadd.f32 %v1846, %v1898
  %v1900 = vpop.f32.mrb[0].mxu0
  %v1901 = vadd.f32 %v1848, %v1900
  %v1902 = vpop.f32.mrb[0].mxu0
  %v1903 = vadd.f32 %v1850, %v1902
  %1904 = vdwg.mxu0
  %v1905 = vmax.f32 %v1675, 0.0
  %v1906 = vmax.f32 %v1677, 0.0
  %v1907 = vmax.f32 %v1887, 0.0
  %v1908 = vmax.f32 %v1889, 0.0
  %v1909 = vmax.f32 %v1679, 0.0
  %v1910 = vmax.f32 %v1681, 0.0
  %v1911 = vmax.f32 %v1891, 0.0
  %v1912 = vmax.f32 %v1893, 0.0
  %v1913 = vmax.f32 %v1685, 0.0
  %v1914 = vmax.f32 %v1687, 0.0
  %v1915 = vmax.f32 %v1897, 0.0
  %v1916 = vmax.f32 %v1899, 0.0
  %v1917 = vmax.f32 %v1689, 0.0
  %v1918 = vmax.f32 %v1691, 0.0
  %v1919 = vmax.f32 %v1901, 0.0
  %v1920 = vmax.f32 %v1903, 0.0
  %v1921 = vpack.c.bf16 %v1909, %v1905
  %v1922 = vpack.c.bf16 %v1910, %v1906
  %v1923 = vpack.c.bf16 %v1911, %v1907
  %v1924 = vpack.c.bf16 %v1912, %v1908
  %v1925 = vpack.c.bf16 %v1917, %v1913
  %v1926 = vpack.c.bf16 %v1918, %v1914
  %v1927 = vpack.c.bf16 %v1919, %v1915
  %v1928 = vpack.c.bf16 %v1920, %v1916
  %v1929 = vld [vmem:[%s3] sm:$0xf]
  %v1930 = vld [vmem:[%s3 + $0x4] sm:$0xf]
  %v1931 = vld [vmem:[%s3 + $0x8] sm:$0xf]
  %v1932 = vld [vmem:[%s3 + $0xc] sm:$0xf]
  %v1933 = vld [vmem:[%s3 + $0x10] sm:$0xf]
  %v1934 = vld [vmem:[%s3 + $0x14] sm:$0xf]
  %v1935 = vld [vmem:[%s3 + $0x18] sm:$0xf]
  %v1936 = vld [vmem:[%s3 + $0x1c] sm:$0xf]
  %v1937 = vld [vmem:[%s3 + $0x20] sm:$0xf]
  %v1938 = vld [vmem:[%s3 + $0x24] sm:$0xf]
  %v1939 = vld [vmem:[%s3 + $0x28] sm:$0xf]
  %v1940 = vld [vmem:[%s3 + $0x2c] sm:$0xf]
  %v1941 = vld [vmem:[%s3 + $0x30] sm:$0xf]
  %v1942 = vld [vmem:[%s3 + $0x34] sm:$0xf]
  %v1943 = vld [vmem:[%s3 + $0x38] sm:$0xf]
  %v1944 = vld [vmem:[%s3 + $0x3c] sm:$0xf]
  %v1945 = vld [vmem:[%s3 + $0x40] sm:$0xf]
  %v1946 = vld [vmem:[%s3 + $0x44] sm:$0xf]
  %v1947 = vld [vmem:[%s3 + $0x48] sm:$0xf]
  %v1948 = vld [vmem:[%s3 + $0x4c] sm:$0xf]
  %v1949 = vld [vmem:[%s3 + $0x50] sm:$0xf]
  %v1950 = vld [vmem:[%s3 + $0x54] sm:$0xf]
  %v1951 = vld [vmem:[%s3 + $0x58] sm:$0xf]
  %v1952 = vld [vmem:[%s3 + $0x5c] sm:$0xf]
  %v1953 = vld [vmem:[%s3 + $0x60] sm:$0xf]
  %v1954 = vld [vmem:[%s3 + $0x64] sm:$0xf]
  %v1955 = vld [vmem:[%s3 + $0x68] sm:$0xf]
  %v1956 = vld [vmem:[%s3 + $0x6c] sm:$0xf]
  %v1957 = vld [vmem:[%s3 + $0x70] sm:$0xf]
  %v1958 = vld [vmem:[%s3 + $0x74] sm:$0xf]
  %v1959 = vld [vmem:[%s3 + $0x78] sm:$0xf]
  %v1960 = vld [vmem:[%s3 + $0x7c] sm:$0xf]
  %v1961 = vld [vmem:[%s3 + $0x80] sm:$0xf]
  %v1962 = vld [vmem:[%s3 + $0x84] sm:$0xf]
  %v1963 = vld [vmem:[%s3 + $0x88] sm:$0xf]
  %v1964 = vld [vmem:[%s3 + $0x8c] sm:$0xf]
  %v1965 = vld [vmem:[%s3 + $0x90] sm:$0xf]
  %v1966 = vld [vmem:[%s3 + $0x94] sm:$0xf]
  %v1967 = vld [vmem:[%s3 + $0x98] sm:$0xf]
  %v1968 = vld [vmem:[%s3 + $0x9c] sm:$0xf]
  %v1969 = vld [vmem:[%s3 + $0xa0] sm:$0xf]
  %v1970 = vld [vmem:[%s3 + $0xa4] sm:$0xf]
  %v1971 = vld [vmem:[%s3 + $0xa8] sm:$0xf]
  %v1972 = vld [vmem:[%s3 + $0xac] sm:$0xf]
  %v1973 = vld [vmem:[%s3 + $0xb0] sm:$0xf]
  %v1974 = vld [vmem:[%s3 + $0xb4] sm:$0xf]
  %v1975 = vld [vmem:[%s3 + $0xb8] sm:$0xf]
  %v1976 = vld [vmem:[%s3 + $0xbc] sm:$0xf]
  %v1977 = vld [vmem:[%s3 + $0xc0] sm:$0xf]
  %v1978 = vld [vmem:[%s3 + $0xc4] sm:$0xf]
  %v1979 = vld [vmem:[%s3 + $0xc8] sm:$0xf]
  %v1980 = vld [vmem:[%s3 + $0xcc] sm:$0xf]
  %v1981 = vld [vmem:[%s3 + $0xd0] sm:$0xf]
  %v1982 = vld [vmem:[%s3 + $0xd4] sm:$0xf]
  %v1983 = vld [vmem:[%s3 + $0xd8] sm:$0xf]
  %v1984 = vld [vmem:[%s3 + $0xdc] sm:$0xf]
  %v1985 = vld [vmem:[%s3 + $0xe0] sm:$0xf]
  %v1986 = vld [vmem:[%s3 + $0xe4] sm:$0xf]
  %v1987 = vld [vmem:[%s3 + $0xe8] sm:$0xf]
  %v1988 = vld [vmem:[%s3 + $0xec] sm:$0xf]
  %v1989 = vld [vmem:[%s3 + $0xf0] sm:$0xf]
  %v1990 = vld [vmem:[%s3 + $0xf4] sm:$0xf]
  %v1991 = vld [vmem:[%s3 + $0xf8] sm:$0xf]
  %v1992 = vld [vmem:[%s3 + $0xfc] sm:$0xf]
  %v1993 = vld [vmem:[%s4] sm:$0x1]
  %v1995 = vlaneseq
  %v1996 = vshrl.u32 %v1995, 7
  %v1997 = vsub.s32 0, %v1996
  %v1998 = vrot.slane %v1993, %v1997
  %v2064 = vunpack.c.l.b16 %v1929
  %v2065 = vunpack.c.l.b16 %v1930
  %v2066 = vunpack.c.l.b16 %v1931
  %v2067 = vunpack.c.l.b16 %v1932
  %v2068 = vunpack.c.l.b16 %v1933
  %v2069 = vunpack.c.l.b16 %v1934
  %v2070 = vunpack.c.l.b16 %v1935
  %v2071 = vunpack.c.l.b16 %v1936
  %v2072 = vunpack.c.l.b16 %v1937
  %v2073 = vunpack.c.l.b16 %v1938
  %v2074 = vunpack.c.l.b16 %v1939
  %v2075 = vunpack.c.l.b16 %v1940
  %v2076 = vunpack.c.l.b16 %v1941
  %v2077 = vunpack.c.l.b16 %v1942
  %v2078 = vunpack.c.l.b16 %v1943
  %v2079 = vunpack.c.l.b16 %v1944
  %v2080 = vunpack.c.l.b16 %v1945
  %v2081 = vunpack.c.l.b16 %v1946
  %v2082 = vunpack.c.l.b16 %v1947
  %v2083 = vunpack.c.l.b16 %v1948
  %v2084 = vunpack.c.l.b16 %v1949
  %v2085 = vunpack.c.l.b16 %v1950
  %v2086 = vunpack.c.l.b16 %v1951
  %v2087 = vunpack.c.l.b16 %v1952
  %v2088 = vunpack.c.l.b16 %v1953
  %v2089 = vunpack.c.l.b16 %v1954
  %v2090 = vunpack.c.l.b16 %v1955
  %v2091 = vunpack.c.l.b16 %v1956
  %v2092 = vunpack.c.l.b16 %v1957
  %v2093 = vunpack.c.l.b16 %v1958
  %v2094 = vunpack.c.l.b16 %v1959
  %v2095 = vunpack.c.l.b16 %v1960
  %v2096 = vunpack.c.l.b16 %v1961
  %v2097 = vunpack.c.l.b16 %v1962
  %v2098 = vunpack.c.l.b16 %v1963
  %v2099 = vunpack.c.l.b16 %v1964
  %v2100 = vunpack.c.l.b16 %v1965
  %v2101 = vunpack.c.l.b16 %v1966
  %v2102 = vunpack.c.l.b16 %v1967
  %v2103 = vunpack.c.l.b16 %v1968
  %v2104 = vunpack.c.l.b16 %v1969
  %v2105 = vunpack.c.l.b16 %v1970
  %v2106 = vunpack.c.l.b16 %v1971
  %v2107 = vunpack.c.l.b16 %v1972
  %v2108 = vunpack.c.l.b16 %v1973
  %v2109 = vunpack.c.l.b16 %v1974
  %v2110 = vunpack.c.l.b16 %v1975
  %v2111 = vunpack.c.l.b16 %v1976
  %v2112 = vunpack.c.l.b16 %v1977
  %v2113 = vunpack.c.l.b16 %v1978
  %v2114 = vunpack.c.l.b16 %v1979
  %v2115 = vunpack.c.l.b16 %v1980
  %v2116 = vunpack.c.l.b16 %v1981
  %v2117 = vunpack.c.l.b16 %v1982
  %v2118 = vunpack.c.l.b16 %v1983
  %v2119 = vunpack.c.l.b16 %v1984
  %v2120 = vunpack.c.l.b16 %v1985
  %v2121 = vunpack.c.l.b16 %v1986
  %v2122 = vunpack.c.l.b16 %v1987
  %v2123 = vunpack.c.l.b16 %v1988
  %v2124 = vunpack.c.l.b16 %v1989
  %v2125 = vunpack.c.l.b16 %v1990
  %v2126 = vunpack.c.l.b16 %v1991
  %v2127 = vunpack.c.l.b16 %v1992
  %v2128 = vpack.c.b16 %v2065, %v2064
  %v2129 = vpack.c.b16 %v2067, %v2066
  %v2130 = vpack.c.b16 %v2069, %v2068
  %v2131 = vpack.c.b16 %v2071, %v2070
  %v2132 = vpack.c.b16 %v2073, %v2072
  %v2133 = vpack.c.b16 %v2075, %v2074
  %v2134 = vpack.c.b16 %v2077, %v2076
  %v2135 = vpack.c.b16 %v2079, %v2078
  %v2136 = vpack.c.b16 %v2081, %v2080
  %v2137 = vpack.c.b16 %v2083, %v2082
  %v2138 = vpack.c.b16 %v2085, %v2084
  %v2139 = vpack.c.b16 %v2087, %v2086
  %v2140 = vpack.c.b16 %v2089, %v2088
  %v2141 = vpack.c.b16 %v2091, %v2090
  %v2142 = vpack.c.b16 %v2093, %v2092
  %v2143 = vpack.c.b16 %v2095, %v2094
  %v2144 = vpack.c.b16 %v2097, %v2096
  %v2145 = vpack.c.b16 %v2099, %v2098
  %v2146 = vpack.c.b16 %v2101, %v2100
  %v2147 = vpack.c.b16 %v2103, %v2102
  %v2148 = vpack.c.b16 %v2105, %v2104
  %v2149 = vpack.c.b16 %v2107, %v2106
  %v2150 = vpack.c.b16 %v2109, %v2108
  %v2151 = vpack.c.b16 %v2111, %v2110
  %v2152 = vpack.c.b16 %v2113, %v2112
  %v2153 = vpack.c.b16 %v2115, %v2114
  %v2154 = vpack.c.b16 %v2117, %v2116
  %v2155 = vpack.c.b16 %v2119, %v2118
  %v2156 = vpack.c.b16 %v2121, %v2120
  %v2157 = vpack.c.b16 %v2123, %v2122
  %v2158 = vpack.c.b16 %v2125, %v2124
  %v2159 = vpack.c.b16 %v2127, %v2126
  %2192 = vmatprep.subr.bf16.mxu0 0
  %2193 = vmatpush1.bf16.msra.mxu0 %v2128
  %2194 = vmatprep.subr.bf16.mxu0 0
  %2195 = vmatpush1.bf16.msra.mxu0 %v2129
  %2196 = vmatprep.subr.bf16.mxu0 0
  %2197 = vmatpush1.bf16.msra.mxu0 %v2130
  %2198 = vmatprep.subr.bf16.mxu0 0
  %2199 = vmatpush1.bf16.msra.mxu0 %v2131
  %2200 = vmatprep.subr.bf16.mxu0 0
  %2201 = vmatpush1.bf16.msra.mxu0 %v2132
  %2202 = vmatprep.subr.bf16.mxu0 0
  %2203 = vmatpush1.bf16.msra.mxu0 %v2133
  %2204 = vmatprep.subr.bf16.mxu0 0
  %2205 = vmatpush1.bf16.msra.mxu0 %v2134
  %2206 = vmatprep.subr.bf16.mxu0 0
  %2207 = vmatpush1.bf16.msra.mxu0 %v2135
  %2208 = vmatprep.subr.bf16.mxu0 0
  %2209 = vmatpush1.bf16.msra.mxu0 %v2136
  %2210 = vmatprep.subr.bf16.mxu0 0
  %2211 = vmatpush1.bf16.msra.mxu0 %v2137
  %2212 = vmatprep.subr.bf16.mxu0 0
  %2213 = vmatpush1.bf16.msra.mxu0 %v2138
  %2214 = vmatprep.subr.bf16.mxu0 0
  %2215 = vmatpush1.bf16.msra.mxu0 %v2139
  %2216 = vmatprep.subr.bf16.mxu0 0
  %2217 = vmatpush1.bf16.msra.mxu0 %v2140
  %2218 = vmatprep.subr.bf16.mxu0 0
  %2219 = vmatpush1.bf16.msra.mxu0 %v2141
  %2220 = vmatprep.subr.bf16.mxu0 0
  %2221 = vmatpush1.bf16.msra.mxu0 %v2142
  %2222 = vmatprep.subr.bf16.mxu0 0
  %2223 = vmatpush1.bf16.msra.mxu0 %v2143
  %2224 = vmatprep.mubr.bf16.mxu0 %v1922
  %2225 = vmatmul.mubr.bf16.gmra.mrb[0].mxu0 %v1921
  %v2226 = vpop.f32.mrb[0].mxu0
  %v2227 = vadd.f32 %v1998, %v2226
  %v2228 = vpop.f32.mrb[0].mxu0
  %v2229 = vpop.f32.mrb[0].mxu0
  %v2230 = vadd.f32 %v1998, %v2229
  %v2231 = vpop.f32.mrb[0].mxu0
  %2232 = vmatprep.mubr.bf16.mxu0 %v1926
  %2233 = vmatmul.mubr.bf16.gmra.mrb[0].mxu0 %v1925
  %v2234 = vpop.f32.mrb[0].mxu0
  %v2235 = vadd.f32 %v1998, %v2234
  %v2236 = vpop.f32.mrb[0].mxu0
  %v2237 = vpop.f32.mrb[0].mxu0
  %v2238 = vadd.f32 %v1998, %v2237
  %v2239 = vpop.f32.mrb[0].mxu0
  %2240 = vdwg.mxu0
  %2241 = vmatprep.subr.bf16.mxu0 0
  %2242 = vmatpush1.bf16.msra.mxu0 %v2144
  %2243 = vmatprep.subr.bf16.mxu0 0
  %2244 = vmatpush1.bf16.msra.mxu0 %v2145
  %2245 = vmatprep.subr.bf16.mxu0 0
  %2246 = vmatpush1.bf16.msra.mxu0 %v2146
  %2247 = vmatprep.subr.bf16.mxu0 0
  %2248 = vmatpush1.bf16.msra.mxu0 %v2147
  %2249 = vmatprep.subr.bf16.mxu0 0
  %2250 = vmatpush1.bf16.msra.mxu0 %v2148
  %2251 = vmatprep.subr.bf16.mxu0 0
  %2252 = vmatpush1.bf16.msra.mxu0 %v2149
  %2253 = vmatprep.subr.bf16.mxu0 0
  %2254 = vmatpush1.bf16.msra.mxu0 %v2150
  %2255 = vmatprep.subr.bf16.mxu0 0
  %2256 = vmatpush1.bf16.msra.mxu0 %v2151
  %2257 = vmatprep.subr.bf16.mxu0 0
  %2258 = vmatpush1.bf16.msra.mxu0 %v2152
  %2259 = vmatprep.subr.bf16.mxu0 0
  %2260 = vmatpush1.bf16.msra.mxu0 %v2153
  %2261 = vmatprep.subr.bf16.mxu0 0
  %2262 = vmatpush1.bf16.msra.mxu0 %v2154
  %2263 = vmatprep.subr.bf16.mxu0 0
  %2264 = vmatpush1.bf16.msra.mxu0 %v2155
  %2265 = vmatprep.subr.bf16.mxu0 0
  %2266 = vmatpush1.bf16.msra.mxu0 %v2156
  %2267 = vmatprep.subr.bf16.mxu0 0
  %2268 = vmatpush1.bf16.msra.mxu0 %v2157
  %2269 = vmatprep.subr.bf16.mxu0 0
  %2270 = vmatpush1.bf16.msra.mxu0 %v2158
  %2271 = vmatprep.subr.bf16.mxu0 0
  %2272 = vmatpush1.bf16.msra.mxu0 %v2159
  %2273 = vmatprep.mubr.bf16.mxu0 %v1924
  %2274 = vmatmul.mubr.bf16.gmra.mrb[0].mxu0 %v1923
  %v2275 = vpop.f32.mrb[0].mxu0
  %v2276 = vadd.f32 %v2227, %v2275
  %v2277 = vpop.f32.mrb[0].mxu0
  %v2278 = vpop.f32.mrb[0].mxu0
  %v2279 = vadd.f32 %v2230, %v2278
  %v2280 = vpop.f32.mrb[0].mxu0
  %2281 = vmatprep.mubr.bf16.mxu0 %v1928
  %2282 = vmatmul.mubr.bf16.gmra.mrb[0].mxu0 %v1927
  %v2283 = vpop.f32.mrb[0].mxu0
  %v2284 = vadd.f32 %v2235, %v2283
  %v2285 = vpop.f32.mrb[0].mxu0
  %v2286 = vpop.f32.mrb[0].mxu0
  %v2287 = vadd.f32 %v2238, %v2286
  %v2288 = vpop.f32.mrb[0].mxu0
  %2289 = vdwg.mxu0
  %v2290 = vmax.f32 %v2276, 0.0
  %v2291 = vmax.f32 %v2279, 0.0
  %v2292 = vmax.f32 %v2284, 0.0
  %v2293 = vmax.f32 %v2287, 0.0
  %v2294 = vpack.c.bf16 %v2291, %v2290
  %v2295 = vpack.c.bf16 %v2293, %v2292
  %v2296 = vld [vmem:[%s5] sm:$0xf]
  %v2297 = vld [vmem:[%s5 + $0x4] sm:$0xf]
  %v2298 = vld [vmem:[%s5 + $0x8] sm:$0xf]
  %v2299 = vld [vmem:[%s5 + $0xc] sm:$0xf]
  %v2300 = vld [vmem:[%s5 + $0x10] sm:$0xf]
  %v2301 = vld [vmem:[%s5 + $0x14] sm:$0xf]
  %v2302 = vld [vmem:[%s5 + $0x18] sm:$0xf]
  %v2303 = vld [vmem:[%s5 + $0x1c] sm:$0xf]
  %v2304 = vld [vmem:[%s5 + $0x20] sm:$0xf]
  %v2305 = vld [vmem:[%s5 + $0x24] sm:$0xf]
  %v2306 = vld [vmem:[%s5 + $0x28] sm:$0xf]
  %v2307 = vld [vmem:[%s5 + $0x2c] sm:$0xf]
  %v2308 = vld [vmem:[%s5 + $0x30] sm:$0xf]
  %v2309 = vld [vmem:[%s5 + $0x34] sm:$0xf]
  %v2310 = vld [vmem:[%s5 + $0x38] sm:$0xf]
  %v2311 = vld [vmem:[%s5 + $0x3c] sm:$0xf]
  %v2312 = vld [vmem:[%s6] sm:$0x1]
  %v2314 = vlaneseq
  %v2315 = vshrl.u32 %v2314, 7
  %v2316 = vsub.s32 0, %v2315
  %v2317 = vrot.slane %v2312, %v2316
  %v2335 = vunpack.c.l.b16 %v2296
  %v2336 = vunpack.c.l.b16 %v2297
  %v2337 = vunpack.c.l.b16 %v2298
  %v2338 = vunpack.c.l.b16 %v2299
  %v2339 = vunpack.c.l.b16 %v2300
  %v2340 = vunpack.c.l.b16 %v2301
  %v2341 = vunpack.c.l.b16 %v2302
  %v2342 = vunpack.c.l.b16 %v2303
  %v2343 = vunpack.c.l.b16 %v2304
  %v2344 = vunpack.c.l.b16 %v2305
  %v2345 = vunpack.c.l.b16 %v2306
  %v2346 = vunpack.c.l.b16 %v2307
  %v2347 = vunpack.c.l.b16 %v2308
  %v2348 = vunpack.c.l.b16 %v2309
  %v2349 = vunpack.c.l.b16 %v2310
  %v2350 = vunpack.c.l.b16 %v2311
  %v2351 = vpack.c.b16 %v2336, %v2335
  %v2352 = vpack.c.b16 %v2338, %v2337
  %v2353 = vpack.c.b16 %v2340, %v2339
  %v2354 = vpack.c.b16 %v2342, %v2341
  %v2355 = vpack.c.b16 %v2344, %v2343
  %v2356 = vpack.c.b16 %v2346, %v2345
  %v2357 = vpack.c.b16 %v2348, %v2347
  %v2358 = vpack.c.b16 %v2350, %v2349
  %2367 = vmatprep.subr.bf16.mxu0 0
  %2368 = vmatpush1.bf16.msra.mxu0 %v2351
  %2369 = vmatprep.subr.bf16.mxu0 0
  %2370 = vmatpush1.bf16.msra.mxu0 %v2352
  %2371 = vmatprep.subr.bf16.mxu0 0
  %2372 = vmatpush1.bf16.msra.mxu0 %v2353
  %2373 = vmatprep.subr.bf16.mxu0 0
  %2374 = vmatpush1.bf16.msra.mxu0 %v2354
  %2375 = vmatprep.subr.bf16.mxu0 0
  %2376 = vmatpush1.bf16.msra.mxu0 %v2355
  %2377 = vmatprep.subr.bf16.mxu0 0
  %2378 = vmatpush1.bf16.msra.mxu0 %v2356
  %2379 = vmatprep.subr.bf16.mxu0 0
  %2380 = vmatpush1.bf16.msra.mxu0 %v2357
  %2381 = vmatprep.subr.bf16.mxu0 0
  %2382 = vmatpush1.bf16.msra.mxu0 %v2358
  %2383 = vmatprep.subr.bf16.mxu0 0
  %2384 = vmatpush1.bf16.msra.mxu0 0
  %2385 = vmatprep.subr.bf16.mxu0 0
  %2386 = vmatpush1.bf16.msra.mxu0 0
  %2387 = vmatprep.subr.bf16.mxu0 0
  %2388 = vmatpush1.bf16.msra.mxu0 0
  %2389 = vmatprep.subr.bf16.mxu0 0
  %2390 = vmatpush1.bf16.msra.mxu0 0
  %2391 = vmatprep.subr.bf16.mxu0 0
  %2392 = vmatpush1.bf16.msra.mxu0 0
  %2393 = vmatprep.subr.bf16.mxu0 0
  %2394 = vmatpush1.bf16.msra.mxu0 0
  %2395 = vmatprep.subr.bf16.mxu0 0
  %2396 = vmatpush1.bf16.msra.mxu0 0
  %2397 = vmatprep.subr.bf16.mxu0 0
  %2398 = vmatpush1.bf16.msra.mxu0 0
  %2399 = vmatprep.mubr.bf16.mxu0 0
  %2400 = vmatmul.mubr.bf16.gmra.mrb[0].mxu0 %v2294
  %v2401 = vpop.f32.mrb[0].mxu0
  %v2402 = vadd.f32 %v2317, %v2401
  %v2403 = vpop.f32.mrb[0].mxu0
  %v2404 = vpop.f32.mrb[0].mxu0
  %v2405 = vadd.f32 %v2317, %v2404
  %v2406 = vpop.f32.mrb[0].mxu0
  %2407 = vmatprep.mubr.bf16.mxu0 0
  %2408 = vmatmul.mubr.bf16.gmra.mrb[0].mxu0 %v2295
  %v2409 = vpop.f32.mrb[0].mxu0
  %v2410 = vadd.f32 %v2317, %v2409
  %v2411 = vpop.f32.mrb[0].mxu0
  %v2412 = vpop.f32.mrb[0].mxu0
  %v2413 = vadd.f32 %v2317, %v2412
  %v2414 = vpop.f32.mrb[0].mxu0
  %2415 = vdwg.mxu0
  %v2416 = vlaneseq
  %v2417 = vand.u32 %v2416, 127
  %vm2418 = vcmp.lt.s32.totalorder %v2417, 10
  %v2419 = vsel %vm2418, %v2402, -1e+30
  %v2420 = vsel %vm2418, %v2405, -1e+30
  %v2421 = vsel %vm2418, %v2410, -1e+30
  %v2422 = vsel %vm2418, %v2413, -1e+30
  %2423 = vmax.xlane.f32.xlu0 %v2419
  %v2424 = vpop.xlane.xlu0 %2423
  %2425 = vmax.xlane.f32.xlu0 %v2420
  %v2426 = vpop.xlane.xlu0 %2425
  %2427 = vmax.xlane.f32.xlu0 %v2421
  %v2428 = vpop.xlane.xlu0 %2427
  %2429 = vmax.xlane.f32.xlu0 %v2422
  %v2430 = vpop.xlane.xlu0 %2429
  %v2431 = vsub.f32 %v2419, %v2424
  %v2432 = vsub.f32 %v2420, %v2426
  %v2433 = vsub.f32 %v2421, %v2428
  %v2434 = vsub.f32 %v2422, %v2430
  %v2435 = vmul.f32 %v2431, 1.442695
  %v2436 = vpow.pop %v2435
  %v2437 = vmul.f32 %v2432, 1.442695
  %v2438 = vpow.pop %v2437
  %v2439 = vmul.f32 %v2433, 1.442695
  %v2440 = vpow.pop %v2439
  %v2441 = vmul.f32 %v2434, 1.442695
  %v2442 = vpow.pop %v2441
  %2443 = vadd.xlane.f32.xlu0 %v2436
  %v2444 = vpop.xlane.xlu0 %2443
  %2445 = vadd.xlane.f32.xlu0 %v2438
  %v2446 = vpop.xlane.xlu0 %2445
  %2447 = vadd.xlane.f32.xlu0 %v2440
  %v2448 = vpop.xlane.xlu0 %2447
  %2449 = vadd.xlane.f32.xlu0 %v2442
  %v2450 = vpop.xlane.xlu0 %2449
  %v2451 = vrcp.pop %v2444
  %v2452 = vrcp.pop %v2446
  %v2453 = vrcp.pop %v2448
  %v2454 = vrcp.pop %v2450
  %v2455 = vmul.f32 %v2436, %v2451
  %v2456 = vmul.f32 %v2438, %v2452
  %v2457 = vmul.f32 %v2440, %v2453
  %v2458 = vmul.f32 %v2442, %v2454
  %2459 = vst [vmem:[%s7] sm:$0xff] %v2455
  %2460 = vst [vmem:[%s7 + $0x8] sm:$0xff] %v2456
  %2461 = vst [vmem:[%s7 + $0x10] sm:$0xff] %v2457
  %2462 = vst [vmem:[%s7 + $0x18] sm:$0xff] %v2458
  // Predicated region
  $region30: #{mlp_forward.1} parent=0 // pred_check
    _
  $region31: #{mlp_forward.1} parent=0 // pred_check_branch
    %2464 = sbr.rel (0) target = $region33
  $region32: #{mlp_forward.1} parent=0 // pred_region
    _
  $region33: #{mlp_forward.1} parent=0 // pred_fallthru
    _
  // Predicated region
  $region34: #{mlp_forward.1} parent=0 // pred_check
    _
  $region35: #{mlp_forward.1} parent=0 // pred_check_branch
    %2466 = sbr.rel (0) target = $region37
  $region36: #{mlp_forward.1} parent=0 // pred_region
    _
  $region37: #{mlp_forward.1} parent=0 // pred_fallthru
    _

</llo_original>
